<compile_context>
chip_gen: v5e
topology: v5e:2x2
jax: 0.10.0
libtpu: 0.0.40
codegen_flags: <defaults>
</compile_context>

<pallas_src>
import math
import numpy as np
import jax
import jax.numpy as jnp
from jax import lax
from jax.experimental import pallas as pl
from jax.experimental.pallas import tpu as pltpu

# ---------------- configuration (mirrors kwargs of the module) --------------
INPUT_SIZE = 32      # kwargs.input_size
PROJ_DIM   = 32      # kwargs.proj_dim
N_LAYERS   = 2       # kwargs.rnn_n_layers (wavefront kernel assumes 2)
MAX_LEN    = 8       # kwargs.max_length
BATCH      = 2
SEQ_LEN    = 8
BN_EPS     = 1e-5
ROWS_PAD   = 8       # padded sublane rows per timestep (2*BATCH=4 -> 8)

assert N_LAYERS == 2, "fused wavefront kernel is specialized for 2 GRU layers"

# synthetic deterministic vocab (original builds it from the knowledge base)
# TODO(synk): vocabulary is normally derived from the OWL knowledge base; a
#             deterministic synthetic vocab of identical structure is used here.
_atomic = ["A", "B", "C", "D"]
_roles  = ["r", "s"]
_vocab_list = sorted(_atomic + _roles +
                     ['⊔', '⊓', '∃', '∀', '¬', '⊤', '⊥', '.', ' ', '(', ')']) + ['PAD']
INV_VOCAB  = np.array(_vocab_list, dtype=object)
VOCAB_SIZE = len(_vocab_list)

OUT_DIM = VOCAB_SIZE * MAX_LEN                   # 144
OUT_PAD = ((OUT_DIM + 127) // 128) * 128         # 256 (lane-dense store width)

_VMEM_SPEC = pl.BlockSpec(memory_space=pltpu.MemorySpace.VMEM)

# ---------------- parameter-slab layout (one DMA for all weights) ------------
_H  = PROJ_DIM
SLAB_W   = max(OUT_PAD, 6 * _H)                  # 256
_R_WIHA  = 0                                     # [32, 96]  W_ih layer A
_R_WHAIB = _R_WIHA + INPUT_SIZE                  # [32, 192] [W_hh(A) | W_ih(B)]
_R_WHHB  = _R_WHAIB + _H                         # [32, 96]  W_hh layer B
_R_W1T   = _R_WHHB + _H                          # [32, 32]  fc1 top half
_R_W1B   = _R_W1T + _H                           # [32, 32]  fc1 bottom half
_R_W2    = _R_W1B + _H                           # [32, 32]  fc2
_R_W3    = _R_W2 + _H                            # [32, 256] fc3 (BN folded, padded)
_R_BIASA = _R_W3 + _H                            # [1, 96]  b_ih(A)+[b_hr,b_hz,0]
_R_BHNA  = _R_BIASA + 8                          # [1, 32]  b_hn(A)
_R_BIASB = _R_BHNA + 8                           # [1, 96]  b_ih(B)+[b_hr,b_hz,0]
_R_BHNB  = _R_BIASB + 8                          # [1, 32]  b_hn(B)
_R_B1    = _R_BHNB + 8                           # [1, 32]
_R_B2    = _R_B1 + 8                             # [1, 32]
_R_B3    = _R_B2 + 8                             # [1, 256] fc3 bias (BN folded)
SLAB_ROWS = _R_B3 + 8                            # 280


# ---------------- erf-GELU (Abramowitz–Stegun 7.1.26 polynomial) -------------
def _erf(x):
    # max abs error ~1.5e-7; only uses exp / mul / add (safe Mosaic lowering)
    a1, a2, a3, a4, a5 = 0.254829592, -0.284496736, 1.421413741, -1.453152027, 1.061405429
    p = 0.3275911
    sgn = jnp.where(x >= 0.0, 1.0, -1.0)
    ax = jnp.abs(x)
    t = 1.0 / (1.0 + p * ax)
    poly = ((((a5 * t + a4) * t + a3) * t + a2) * t + a1) * t
    y = 1.0 - poly * jnp.exp(-ax * ax)
    return sgn * y


def _gelu_erf(x):
    # matches torch.nn.functional.gelu default (erf formulation, ~1.5e-7 approx)
    return 0.5 * x * (1.0 + _erf(x * (1.0 / math.sqrt(2.0))))


# ---------------- fused forward kernel ---------------------------------------
def _fused_forward_kernel(x_ref, p_ref, out_ref):
    # x_ref: [T * ROWS_PAD, D_in]; for each timestep t, rows t*8 .. t*8+7 are
    #   [x1_b0, x1_b1, x2_b0, x2_b1, 0, 0, 0, 0]
    # p_ref: [SLAB_ROWS, SLAB_W] packed parameter slab (layout above)
    # out_ref: [B, OUT_PAD] lane-dense padded fc3 output
    H, H2, H3 = PROJ_DIM, 2 * PROJ_DIM, 3 * PROJ_DIM
    R = ROWS_PAD
    B = out_ref.shape[0]
    T = x_ref.shape[0] // R

    # ----- hoisted parameter loads (static, lane-0 aligned slices) ----------
    wihA   = p_ref[_R_WIHA:_R_WIHA + INPUT_SIZE, 0:H3]       # [D, 96]
    w_haib = p_ref[_R_WHAIB:_R_WHAIB + H, 0:2 * H3]          # [32, 192]
    whhB   = p_ref[_R_WHHB:_R_WHHB + H, 0:H3]                # [32, 96]
    w1_top = p_ref[_R_W1T:_R_W1T + H, 0:H]                   # [32, 32]
    w1_bot = p_ref[_R_W1B:_R_W1B + H, 0:H]                   # [32, 32]
    w2     = p_ref[_R_W2:_R_W2 + H, 0:H]                     # [32, 32]
    w3     = p_ref[_R_W3:_R_W3 + H, 0:OUT_PAD]               # [32, 256]

    biasA  = p_ref[_R_BIASA:_R_BIASA + 1, 0:H3]              # [1, 96]
    bhnA   = jnp.broadcast_to(p_ref[_R_BHNA:_R_BHNA + 1, 0:H], (R, H))
    biasB  = jnp.broadcast_to(p_ref[_R_BIASB:_R_BIASB + 1, 0:H3], (R, H3))
    bhnB   = jnp.broadcast_to(p_ref[_R_BHNB:_R_BHNB + 1, 0:H], (R, H))
    b1     = p_ref[_R_B1:_R_B1 + 1, 0:H]                     # [1, 32]
    b2     = p_ref[_R_B2:_R_B2 + 1, 0:H]                     # [1, 32]
    b3     = p_ref[_R_B3:_R_B3 + 1, 0:OUT_PAD]               # [1, 256]

    # ----- layer-A input projection for ALL timesteps (one MXU matmul) ------
    # b_ih(A) and the r/z components of b_hh(A) are folded into biasA.
    giA_all = jnp.dot(x_ref[...], wihA,
                      preferred_element_type=jnp.float32) + biasA   # [T*R, 96]

    h1  = jnp.zeros((R, H), jnp.float32)
    h2  = jnp.zeros((R, H), jnp.float32)
    acc = jnp.zeros((R, H), jnp.float32)      # running time-sum of layer-B outputs
    zeros3h = jnp.zeros((R, H3), jnp.float32)

    def gru_cell(gi, gh, h, bhn):
        # gi already carries b_ih + [b_hr, b_hz, 0]; gh carries no bias.
        s = gi + gh                                           # n-slice unused
        rz = jax.nn.sigmoid(s[:, 0:H2])                       # fused r/z (one push)
        r, z = rz[:, 0:H], rz[:, H:H2]
        n = jnp.tanh(gi[:, H2:H3] + r * (gh[:, H2:H3] + bhn)) # b_hn stays inside r*(...)
        return (1.0 - z) * n + z * h

    # ----- wavefront: step s runs layer-A timestep s and layer-B timestep s-1
    for s in range(T + 1):
        if s > 0:
            # one matmul gives layer-A's gh and layer-B's gi (both from h1[s-1]);
            # layer-B's gh is an independent matmul that pipelines behind it.
            mA  = jnp.dot(h1, w_haib, preferred_element_type=jnp.float32)  # [R, 192]
            ghB = jnp.dot(h2, whhB, preferred_element_type=jnp.float32)    # [R, 96]
            ghA = mA[:, 0:H3]
            giB = mA[:, H3:2 * H3] + biasB
        else:
            ghA = zeros3h                                      # h1[-1] == 0

        if s < T:
            giA = giA_all[s * R:(s + 1) * R, :]
            h1_new = gru_cell(giA, ghA, h1, bhnA)

        if s > 0:
            h2 = gru_cell(giB, ghB, h2, bhnB)                  # layer-B timestep s-1
            acc = acc + h2

        if s < T:
            h1 = h1_new

    # ----- head --------------------------------------------------------------
    # acc rows [0:B] = sum_t seq1, rows [B:2B] = sum_t seq2 (rows 4..7 are junk
    # from padding and are never read).  fc1 on the concat is computed as two
    # matmuls against the top/bottom halves of w1 (no lane concat).
    out1 = acc[0:B, :]
    out2 = acc[B:2 * B, :]
    hd = (jnp.dot(out1, w1_top, preferred_element_type=jnp.float32)
          + jnp.dot(out2, w1_bot, preferred_element_type=jnp.float32) + b1)
    hd = _gelu_erf(hd)
    hd = hd + jnp.maximum(
        jnp.dot(hd, w2, preferred_element_type=jnp.float32) + b2, 0.0)
    # BatchNorm (eval-mode) is folded into w3/b3 at init.
    out_ref[...] = jnp.dot(hd, w3, preferred_element_type=jnp.float32) + b3


# ---------------- deterministic parameter initialization ---------------------
def init_params(key):
    bound = 1.0 / math.sqrt(PROJ_DIM)
    params = {"gru": []}
    for l in range(N_LAYERS):
        d_in = INPUT_SIZE if l == 0 else PROJ_DIM
        key, k1, k2, k3, k4 = jax.random.split(key, 5)
        params["gru"].append({
            # fused gate layout along last dim: [0:H]=r, [H:2H]=z, [2H:3H]=n
            # (PyTorch GRU gate order), weights pre-transposed to [in, 3H]
            "w_ih": jax.random.uniform(k1, (d_in, 3 * PROJ_DIM), jnp.float32, -bound, bound),
            "w_hh": jax.random.uniform(k2, (PROJ_DIM, 3 * PROJ_DIM), jnp.float32, -bound, bound),
            "b_ih": jax.random.uniform(k3, (1, 3 * PROJ_DIM), jnp.float32, -bound, bound),
            "b_hh": jax.random.uniform(k4, (1, 3 * PROJ_DIM), jnp.float32, -bound, bound),
        })
    key, k1, k2, k3, k4, k5, k6 = jax.random.split(key, 7)
    b1 = 1.0 / math.sqrt(2 * PROJ_DIM)
    b2 = 1.0 / math.sqrt(PROJ_DIM)
    params.update({
        # fc1: Linear(2H -> H), stored transposed [2H, H]
        "w1": jax.random.uniform(k1, (2 * PROJ_DIM, PROJ_DIM), jnp.float32, -b1, b1),
        "b1": jax.random.uniform(k2, (1, PROJ_DIM), jnp.float32, -b1, b1),
        # fc2: Linear(H -> H)
        "w2": jax.random.uniform(k3, (PROJ_DIM, PROJ_DIM), jnp.float32, -b2, b2),
        "b2": jax.random.uniform(k4, (1, PROJ_DIM), jnp.float32, -b2, b2),
        # fc3: Linear(H -> VOCAB_SIZE * MAX_LEN), stored transposed [H, V*L]
        "w3": jax.random.uniform(k5, (PROJ_DIM, OUT_DIM), jnp.float32, -b2, b2),
        "b3": jax.random.uniform(k6, (1, OUT_DIM), jnp.float32, -b2, b2),
        # BatchNorm1d(H) running stats / affine (eval-mode)
        # TODO(synk): plumb trained running stats here when loading real weights.
        "bn_gamma": jnp.ones((1, PROJ_DIM), jnp.float32),
        "bn_beta": jnp.zeros((1, PROJ_DIM), jnp.float32),
        "bn_mean": jnp.zeros((1, PROJ_DIM), jnp.float32),
        "bn_var": jnp.ones((1, PROJ_DIM), jnp.float32),
    })
    return params


def pack_params(params):
    """Pack all parameters (BN folded into fc3, fc3 padded) into one f32 slab."""
    p = jax.tree_util.tree_map(np.asarray, params)
    H = PROJ_DIM
    slab = np.zeros((SLAB_ROWS, SLAB_W), np.float32)

    gA, gB = p["gru"][0], p["gru"][1]
    slab[_R_WIHA:_R_WIHA + INPUT_SIZE, 0:3 * H] = gA["w_ih"]
    slab[_R_WHAIB:_R_WHAIB + H, 0:3 * H]        = gA["w_hh"]
    slab[_R_WHAIB:_R_WHAIB + H, 3 * H:6 * H]    = gB["w_ih"]
    slab[_R_WHHB:_R_WHHB + H, 0:3 * H]          = gB["w_hh"]
    slab[_R_W1T:_R_W1T + H, 0:H] = p["w1"][0:H]
    slab[_R_W1B:_R_W1B + H, 0:H] = p["w1"][H:2 * H]
    slab[_R_W2:_R_W2 + H, 0:H]   = p["w2"]

    # eval-mode BatchNorm folded into fc3:  y = (x*scale + shift) @ w3 + b3
    scale = p["bn_gamma"][0] / np.sqrt(p["bn_var"][0] + BN_EPS)
    shift = p["bn_beta"][0] - p["bn_mean"][0] * scale
    w3f = scale[:, None] * p["w3"]                     # [H, OUT_DIM]
    b3f = shift @ p["w3"] + p["b3"][0]                 # [OUT_DIM]
    slab[_R_W3:_R_W3 + H, 0:OUT_DIM] = w3f
    slab[_R_B3, 0:OUT_DIM] = b3f

    # GRU biases: fold b_hh r/z into the gi bias; keep b_hn separate.
    bA = gA["b_ih"][0].copy(); bA[0:2 * H] += gA["b_hh"][0, 0:2 * H]
    bB = gB["b_ih"][0].copy(); bB[0:2 * H] += gB["b_hh"][0, 0:2 * H]
    slab[_R_BIASA, 0:3 * H] = bA
    slab[_R_BHNA, 0:H]      = gA["b_hh"][0, 2 * H:3 * H]
    slab[_R_BIASB, 0:3 * H] = bB
    slab[_R_BHNB, 0:H]      = gB["b_hh"][0, 2 * H:3 * H]
    slab[_R_B1, 0:H] = p["b1"][0]
    slab[_R_B2, 0:H] = p["b2"][0]
    return jnp.asarray(slab)


# ---------------- forward -----------------------------------------------------
@jax.jit
def forward_logits(x1, x2, slab):
    B, T, D = x1.shape
    # batch-concat the two sequences, arrange rows (t, b), pad rows 2B=4 -> 8
    x = jnp.concatenate([x1, x2], axis=0).astype(jnp.float32)   # [2B, T, D]
    x = jnp.transpose(x, (1, 0, 2))                             # [T, 2B, D]
    x = jnp.pad(x, ((0, 0), (0, ROWS_PAD - 2 * B), (0, 0)))     # [T, 8, D]
    x = x.reshape(T * ROWS_PAD, D)                              # [(t,r), D]

    out = pl.pallas_call(
        _fused_forward_kernel,
        out_shape=jax.ShapeDtypeStruct((B, OUT_PAD), jnp.float32),
        in_specs=[_VMEM_SPEC, _VMEM_SPEC],
        out_specs=_VMEM_SPEC,
    )(x, slab)

    flat = out[:, :OUT_DIM]                                     # [B, V*L]
    return flat.reshape(-1, VOCAB_SIZE, MAX_LEN)                # matches reshape(-1, |V|, L)


def forward(x1, x2, slab):
    logits = forward_logits(x1, x2, slab)
    # string lookup (self.inv_vocab[...]) is host-side numpy, not a TPU op
    idx = np.asarray(jnp.argmax(logits, axis=1))                # [B, L]
    aligned_chars = INV_VOCAB[idx]
    return aligned_chars, logits


# ---------------- pure-JAX reference (unfused, for correctness check) --------
def _gru_layer_ref(x, w_ih, w_hh, b_ih, b_hh):
    B, T, _ = x.shape
    H = PROJ_DIM
    h = jnp.zeros((B, H), jnp.float32)
    outs = []
    for t in range(T):
        gi = x[:, t, :] @ w_ih + b_ih
        gh = h @ w_hh + b_hh
        r = jax.nn.sigmoid(gi[:, 0:H] + gh[:, 0:H])
        z = jax.nn.sigmoid(gi[:, H:2 * H] + gh[:, H:2 * H])
        n = jnp.tanh(gi[:, 2 * H:3 * H] + r * gh[:, 2 * H:3 * H])
        h = (1.0 - z) * n + z * h
        outs.append(h)
    return jnp.stack(outs, axis=1)


@jax.jit
def forward_reference(x1, x2, params):
    def run(x):
        cur = x.astype(jnp.float32)
        for lp in params["gru"]:
            cur = _gru_layer_ref(cur, lp["w_ih"], lp["w_hh"], lp["b_ih"], lp["b_hh"])
        return cur
    s1 = run(x1).sum(axis=1)
    s2 = run(x2).sum(axis=1)
    xc = jnp.concatenate([s1, s2], axis=1)
    h = jax.nn.gelu(xc @ params["w1"] + params["b1"], approximate=False)
    h = h + jax.nn.relu(h @ params["w2"] + params["b2"])
    h = ((h - params["bn_mean"]) * lax.rsqrt(params["bn_var"] + BN_EPS)
         * params["bn_gamma"] + params["bn_beta"])
    out = h @ params["w3"] + params["b3"]
    return out.reshape(-1, VOCAB_SIZE, MAX_LEN)


if __name__ == "__main__":
    key = jax.random.PRNGKey(0)
    key, kp, kx1, kx2 = jax.random.split(key, 4)
    params = init_params(kp)
    slab = pack_params(params)
    x1 = jax.random.normal(kx1, (BATCH, SEQ_LEN, INPUT_SIZE), jnp.float32)
    x2 = jax.random.normal(kx2, (BATCH, SEQ_LEN, INPUT_SIZE), jnp.float32)

    aligned_chars, logits = forward(x1, x2, slab)
    jax.block_until_ready(logits)
    assert logits.shape == (BATCH, VOCAB_SIZE, MAX_LEN)
    assert aligned_chars.shape == (BATCH, MAX_LEN)

    # correctness vs. pure-JAX reference of the original module semantics
    ref = np.asarray(forward_reference(x1, x2, params))
    np.testing.assert_allclose(np.asarray(logits), ref, rtol=2e-3, atol=2e-3)

    print("KERNEL_OK")
</pallas_src>

<mosaic_0001>
module attributes {stable_mosaic.version = 11 : i64} {
  func.func @_fused_forward_kernel(%arg0: memref<64x32xf32, #tpu.memory_space<vmem>>, %arg1: memref<280x256xf32, #tpu.memory_space<vmem>>, %arg2: memref<2x256xf32, #tpu.memory_space<vmem>>) attributes {dimension_semantics = [], scalar_prefetch = 0 : i64, scratch_operands = 0 : i64, tpu.core_type = #tpu.core_type<tc>} {
    %c0 = arith.constant 0 : index
    %c0_0 = arith.constant 0 : index
    %0 = vector.load %arg1[%c0, %c0_0] : memref<280x256xf32, #tpu.memory_space<vmem>>, vector<32x96xf32>
    %c32 = arith.constant 32 : index
    %c0_1 = arith.constant 0 : index
    %1 = vector.load %arg1[%c32, %c0_1] : memref<280x256xf32, #tpu.memory_space<vmem>>, vector<32x192xf32>
    %c64 = arith.constant 64 : index
    %c0_2 = arith.constant 0 : index
    %2 = vector.load %arg1[%c64, %c0_2] : memref<280x256xf32, #tpu.memory_space<vmem>>, vector<32x96xf32>
    %c96 = arith.constant 96 : index
    %c0_3 = arith.constant 0 : index
    %3 = vector.load %arg1[%c96, %c0_3] : memref<280x256xf32, #tpu.memory_space<vmem>>, vector<32x32xf32>
    %c128 = arith.constant 128 : index
    %c0_4 = arith.constant 0 : index
    %4 = vector.load %arg1[%c128, %c0_4] : memref<280x256xf32, #tpu.memory_space<vmem>>, vector<32x32xf32>
    %c160 = arith.constant 160 : index
    %c0_5 = arith.constant 0 : index
    %5 = vector.load %arg1[%c160, %c0_5] : memref<280x256xf32, #tpu.memory_space<vmem>>, vector<32x32xf32>
    %c192 = arith.constant 192 : index
    %c0_6 = arith.constant 0 : index
    %6 = vector.load %arg1[%c192, %c0_6] : memref<280x256xf32, #tpu.memory_space<vmem>>, vector<32x256xf32>
    %c224 = arith.constant 224 : index
    %c0_7 = arith.constant 0 : index
    %7 = vector.load %arg1[%c224, %c0_7] : memref<280x256xf32, #tpu.memory_space<vmem>>, vector<1x96xf32>
    %c232 = arith.constant 232 : index
    %c0_8 = arith.constant 0 : index
    %8 = vector.load %arg1[%c232, %c0_8] : memref<280x256xf32, #tpu.memory_space<vmem>>, vector<1x32xf32>
    %9 = vector.shape_cast %8 : vector<1x32xf32> to vector<1x32xf32>
    %10 = vector.broadcast %9 : vector<1x32xf32> to vector<8x32xf32>
    %c240 = arith.constant 240 : index
    %c0_9 = arith.constant 0 : index
    %11 = vector.load %arg1[%c240, %c0_9] : memref<280x256xf32, #tpu.memory_space<vmem>>, vector<1x96xf32>
    %12 = vector.shape_cast %11 : vector<1x96xf32> to vector<1x96xf32>
    %13 = vector.broadcast %12 : vector<1x96xf32> to vector<8x96xf32>
    %c248 = arith.constant 248 : index
    %c0_10 = arith.constant 0 : index
    %14 = vector.load %arg1[%c248, %c0_10] : memref<280x256xf32, #tpu.memory_space<vmem>>, vector<1x32xf32>
    %15 = vector.shape_cast %14 : vector<1x32xf32> to vector<1x32xf32>
    %16 = vector.broadcast %15 : vector<1x32xf32> to vector<8x32xf32>
    %c256 = arith.constant 256 : index
    %c0_11 = arith.constant 0 : index
    %17 = vector.load %arg1[%c256, %c0_11] : memref<280x256xf32, #tpu.memory_space<vmem>>, vector<1x32xf32>
    %c264 = arith.constant 264 : index
    %c0_12 = arith.constant 0 : index
    %18 = vector.load %arg1[%c264, %c0_12] : memref<280x256xf32, #tpu.memory_space<vmem>>, vector<1x32xf32>
    %c272 = arith.constant 272 : index
    %c0_13 = arith.constant 0 : index
    %19 = vector.load %arg1[%c272, %c0_13] : memref<280x256xf32, #tpu.memory_space<vmem>>, vector<1x256xf32>
    %c0_14 = arith.constant 0 : index
    %c0_15 = arith.constant 0 : index
    %20 = vector.load %arg0[%c0_14, %c0_15] : memref<64x32xf32, #tpu.memory_space<vmem>>, vector<64x32xf32>
    %cst = arith.constant dense<0.000000e+00> : vector<64x96xf32>
    %21 = tpu.matmul %20, %0, %cst {dimension_numbers = #tpu.dot_dimension_numbers<[1], [0], [0], [1], [0, 0, 1, 1], [], []>} : vector<64x32xf32>, vector<32x96xf32>, vector<64x96xf32> -> vector<64x96xf32>
    %22 = vector.broadcast %7 : vector<1x96xf32> to vector<64x96xf32>
    %23 = arith.addf %21, %22 : vector<64x96xf32>
    %cst_16 = arith.constant 0.000000e+00 : f32
    %24 = vector.broadcast %cst_16 : f32 to vector<8x32xf32>
    %cst_17 = arith.constant 0.000000e+00 : f32
    %25 = vector.broadcast %cst_17 : f32 to vector<8x32xf32>
    %cst_18 = arith.constant 0.000000e+00 : f32
    %26 = vector.broadcast %cst_18 : f32 to vector<8x32xf32>
    %cst_19 = arith.constant 0.000000e+00 : f32
    %27 = vector.broadcast %cst_19 : f32 to vector<8x96xf32>
    %28 = vector.extract_strided_slice %23 {offsets = [0, 0], sizes = [8, 96], strides = [1, 1]} : vector<64x96xf32> to vector<8x96xf32>
    %29 = arith.addf %28, %27 : vector<8x96xf32>
    %30 = vector.extract_strided_slice %29 {offsets = [0, 0], sizes = [8, 64], strides = [1, 1]} : vector<8x96xf32> to vector<8x64xf32>
    %31 = arith.negf %30 : vector<8x64xf32>
    %32 = math.exp %31 : vector<8x64xf32>
    %cst_20 = arith.constant 1.000000e+00 : f32
    %33 = vector.broadcast %cst_20 : f32 to vector<8x64xf32>
    %34 = arith.addf %33, %32 : vector<8x64xf32>
    %35 = arith.divf %33, %34 : vector<8x64xf32>
    %36 = vector.extract_strided_slice %35 {offsets = [0, 0], sizes = [8, 32], strides = [1, 1]} : vector<8x64xf32> to vector<8x32xf32>
    %37 = vector.extract_strided_slice %35 {offsets = [0, 32], sizes = [8, 32], strides = [1, 1]} : vector<8x64xf32> to vector<8x32xf32>
    %38 = vector.extract_strided_slice %28 {offsets = [0, 64], sizes = [8, 32], strides = [1, 1]} : vector<8x96xf32> to vector<8x32xf32>
    %39 = vector.extract_strided_slice %27 {offsets = [0, 64], sizes = [8, 32], strides = [1, 1]} : vector<8x96xf32> to vector<8x32xf32>
    %40 = arith.addf %39, %10 : vector<8x32xf32>
    %41 = arith.mulf %36, %40 : vector<8x32xf32>
    %42 = arith.addf %38, %41 : vector<8x32xf32>
    %43 = math.tanh %42 : vector<8x32xf32>
    %cst_21 = arith.constant 1.000000e+00 : f32
    %44 = vector.broadcast %cst_21 : f32 to vector<8x32xf32>
    %45 = arith.subf %44, %37 : vector<8x32xf32>
    %46 = arith.mulf %45, %43 : vector<8x32xf32>
    %47 = arith.mulf %37, %24 : vector<8x32xf32>
    %48 = arith.addf %46, %47 : vector<8x32xf32>
    %cst_22 = arith.constant dense<0.000000e+00> : vector<8x192xf32>
    %49 = tpu.matmul %48, %1, %cst_22 {dimension_numbers = #tpu.dot_dimension_numbers<[1], [0], [0], [1], [0, 0, 1, 1], [], []>} : vector<8x32xf32>, vector<32x192xf32>, vector<8x192xf32> -> vector<8x192xf32>
    %cst_23 = arith.constant dense<0.000000e+00> : vector<8x96xf32>
    %50 = tpu.matmul %25, %2, %cst_23 {dimension_numbers = #tpu.dot_dimension_numbers<[1], [0], [0], [1], [0, 0, 1, 1], [], []>} : vector<8x32xf32>, vector<32x96xf32>, vector<8x96xf32> -> vector<8x96xf32>
    %51 = vector.extract_strided_slice %49 {offsets = [0, 0], sizes = [8, 96], strides = [1, 1]} : vector<8x192xf32> to vector<8x96xf32>
    %52 = vector.extract_strided_slice %49 {offsets = [0, 96], sizes = [8, 96], strides = [1, 1]} : vector<8x192xf32> to vector<8x96xf32>
    %53 = arith.addf %52, %13 : vector<8x96xf32>
    %54 = vector.extract_strided_slice %23 {offsets = [8, 0], sizes = [8, 96], strides = [1, 1]} : vector<64x96xf32> to vector<8x96xf32>
    %55 = arith.addf %54, %51 : vector<8x96xf32>
    %56 = vector.extract_strided_slice %55 {offsets = [0, 0], sizes = [8, 64], strides = [1, 1]} : vector<8x96xf32> to vector<8x64xf32>
    %57 = arith.negf %56 : vector<8x64xf32>
    %58 = math.exp %57 : vector<8x64xf32>
    %cst_24 = arith.constant 1.000000e+00 : f32
    %59 = vector.broadcast %cst_24 : f32 to vector<8x64xf32>
    %60 = arith.addf %59, %58 : vector<8x64xf32>
    %61 = arith.divf %59, %60 : vector<8x64xf32>
    %62 = vector.extract_strided_slice %61 {offsets = [0, 0], sizes = [8, 32], strides = [1, 1]} : vector<8x64xf32> to vector<8x32xf32>
    %63 = vector.extract_strided_slice %61 {offsets = [0, 32], sizes = [8, 32], strides = [1, 1]} : vector<8x64xf32> to vector<8x32xf32>
    %64 = vector.extract_strided_slice %54 {offsets = [0, 64], sizes = [8, 32], strides = [1, 1]} : vector<8x96xf32> to vector<8x32xf32>
    %65 = vector.extract_strided_slice %51 {offsets = [0, 64], sizes = [8, 32], strides = [1, 1]} : vector<8x96xf32> to vector<8x32xf32>
    %66 = arith.addf %65, %10 : vector<8x32xf32>
    %67 = arith.mulf %62, %66 : vector<8x32xf32>
    %68 = arith.addf %64, %67 : vector<8x32xf32>
    %69 = math.tanh %68 : vector<8x32xf32>
    %cst_25 = arith.constant 1.000000e+00 : f32
    %70 = vector.broadcast %cst_25 : f32 to vector<8x32xf32>
    %71 = arith.subf %70, %63 : vector<8x32xf32>
    %72 = arith.mulf %71, %69 : vector<8x32xf32>
    %73 = arith.mulf %63, %48 : vector<8x32xf32>
    %74 = arith.addf %72, %73 : vector<8x32xf32>
    %75 = arith.addf %53, %50 : vector<8x96xf32>
    %76 = vector.extract_strided_slice %75 {offsets = [0, 0], sizes = [8, 64], strides = [1, 1]} : vector<8x96xf32> to vector<8x64xf32>
    %77 = arith.negf %76 : vector<8x64xf32>
    %78 = math.exp %77 : vector<8x64xf32>
    %cst_26 = arith.constant 1.000000e+00 : f32
    %79 = vector.broadcast %cst_26 : f32 to vector<8x64xf32>
    %80 = arith.addf %79, %78 : vector<8x64xf32>
    %81 = arith.divf %79, %80 : vector<8x64xf32>
    %82 = vector.extract_strided_slice %81 {offsets = [0, 0], sizes = [8, 32], strides = [1, 1]} : vector<8x64xf32> to vector<8x32xf32>
    %83 = vector.extract_strided_slice %81 {offsets = [0, 32], sizes = [8, 32], strides = [1, 1]} : vector<8x64xf32> to vector<8x32xf32>
    %84 = vector.extract_strided_slice %53 {offsets = [0, 64], sizes = [8, 32], strides = [1, 1]} : vector<8x96xf32> to vector<8x32xf32>
    %85 = vector.extract_strided_slice %50 {offsets = [0, 64], sizes = [8, 32], strides = [1, 1]} : vector<8x96xf32> to vector<8x32xf32>
    %86 = arith.addf %85, %16 : vector<8x32xf32>
    %87 = arith.mulf %82, %86 : vector<8x32xf32>
    %88 = arith.addf %84, %87 : vector<8x32xf32>
    %89 = math.tanh %88 : vector<8x32xf32>
    %cst_27 = arith.constant 1.000000e+00 : f32
    %90 = vector.broadcast %cst_27 : f32 to vector<8x32xf32>
    %91 = arith.subf %90, %83 : vector<8x32xf32>
    %92 = arith.mulf %91, %89 : vector<8x32xf32>
    %93 = arith.mulf %83, %25 : vector<8x32xf32>
    %94 = arith.addf %92, %93 : vector<8x32xf32>
    %95 = arith.addf %26, %94 : vector<8x32xf32>
    %cst_28 = arith.constant dense<0.000000e+00> : vector<8x192xf32>
    %96 = tpu.matmul %74, %1, %cst_28 {dimension_numbers = #tpu.dot_dimension_numbers<[1], [0], [0], [1], [0, 0, 1, 1], [], []>} : vector<8x32xf32>, vector<32x192xf32>, vector<8x192xf32> -> vector<8x192xf32>
    %cst_29 = arith.constant dense<0.000000e+00> : vector<8x96xf32>
    %97 = tpu.matmul %94, %2, %cst_29 {dimension_numbers = #tpu.dot_dimension_numbers<[1], [0], [0], [1], [0, 0, 1, 1], [], []>} : vector<8x32xf32>, vector<32x96xf32>, vector<8x96xf32> -> vector<8x96xf32>
    %98 = vector.extract_strided_slice %96 {offsets = [0, 0], sizes = [8, 96], strides = [1, 1]} : vector<8x192xf32> to vector<8x96xf32>
    %99 = vector.extract_strided_slice %96 {offsets = [0, 96], sizes = [8, 96], strides = [1, 1]} : vector<8x192xf32> to vector<8x96xf32>
    %100 = arith.addf %99, %13 : vector<8x96xf32>
    %101 = vector.extract_strided_slice %23 {offsets = [16, 0], sizes = [8, 96], strides = [1, 1]} : vector<64x96xf32> to vector<8x96xf32>
    %102 = arith.addf %101, %98 : vector<8x96xf32>
    %103 = vector.extract_strided_slice %102 {offsets = [0, 0], sizes = [8, 64], strides = [1, 1]} : vector<8x96xf32> to vector<8x64xf32>
    %104 = arith.negf %103 : vector<8x64xf32>
    %105 = math.exp %104 : vector<8x64xf32>
    %cst_30 = arith.constant 1.000000e+00 : f32
    %106 = vector.broadcast %cst_30 : f32 to vector<8x64xf32>
    %107 = arith.addf %106, %105 : vector<8x64xf32>
    %108 = arith.divf %106, %107 : vector<8x64xf32>
    %109 = vector.extract_strided_slice %108 {offsets = [0, 0], sizes = [8, 32], strides = [1, 1]} : vector<8x64xf32> to vector<8x32xf32>
    %110 = vector.extract_strided_slice %108 {offsets = [0, 32], sizes = [8, 32], strides = [1, 1]} : vector<8x64xf32> to vector<8x32xf32>
    %111 = vector.extract_strided_slice %101 {offsets = [0, 64], sizes = [8, 32], strides = [1, 1]} : vector<8x96xf32> to vector<8x32xf32>
    %112 = vector.extract_strided_slice %98 {offsets = [0, 64], sizes = [8, 32], strides = [1, 1]} : vector<8x96xf32> to vector<8x32xf32>
    %113 = arith.addf %112, %10 : vector<8x32xf32>
    %114 = arith.mulf %109, %113 : vector<8x32xf32>
    %115 = arith.addf %111, %114 : vector<8x32xf32>
    %116 = math.tanh %115 : vector<8x32xf32>
    %cst_31 = arith.constant 1.000000e+00 : f32
    %117 = vector.broadcast %cst_31 : f32 to vector<8x32xf32>
    %118 = arith.subf %117, %110 : vector<8x32xf32>
    %119 = arith.mulf %118, %116 : vector<8x32xf32>
    %120 = arith.mulf %110, %74 : vector<8x32xf32>
    %121 = arith.addf %119, %120 : vector<8x32xf32>
    %122 = arith.addf %100, %97 : vector<8x96xf32>
    %123 = vector.extract_strided_slice %122 {offsets = [0, 0], sizes = [8, 64], strides = [1, 1]} : vector<8x96xf32> to vector<8x64xf32>
    %124 = arith.negf %123 : vector<8x64xf32>
    %125 = math.exp %124 : vector<8x64xf32>
    %cst_32 = arith.constant 1.000000e+00 : f32
    %126 = vector.broadcast %cst_32 : f32 to vector<8x64xf32>
    %127 = arith.addf %126, %125 : vector<8x64xf32>
    %128 = arith.divf %126, %127 : vector<8x64xf32>
    %129 = vector.extract_strided_slice %128 {offsets = [0, 0], sizes = [8, 32], strides = [1, 1]} : vector<8x64xf32> to vector<8x32xf32>
    %130 = vector.extract_strided_slice %128 {offsets = [0, 32], sizes = [8, 32], strides = [1, 1]} : vector<8x64xf32> to vector<8x32xf32>
    %131 = vector.extract_strided_slice %100 {offsets = [0, 64], sizes = [8, 32], strides = [1, 1]} : vector<8x96xf32> to vector<8x32xf32>
    %132 = vector.extract_strided_slice %97 {offsets = [0, 64], sizes = [8, 32], strides = [1, 1]} : vector<8x96xf32> to vector<8x32xf32>
    %133 = arith.addf %132, %16 : vector<8x32xf32>
    %134 = arith.mulf %129, %133 : vector<8x32xf32>
    %135 = arith.addf %131, %134 : vector<8x32xf32>
    %136 = math.tanh %135 : vector<8x32xf32>
    %cst_33 = arith.constant 1.000000e+00 : f32
    %137 = vector.broadcast %cst_33 : f32 to vector<8x32xf32>
    %138 = arith.subf %137, %130 : vector<8x32xf32>
    %139 = arith.mulf %138, %136 : vector<8x32xf32>
    %140 = arith.mulf %130, %94 : vector<8x32xf32>
    %141 = arith.addf %139, %140 : vector<8x32xf32>
    %142 = arith.addf %95, %141 : vector<8x32xf32>
    %cst_34 = arith.constant dense<0.000000e+00> : vector<8x192xf32>
    %143 = tpu.matmul %121, %1, %cst_34 {dimension_numbers = #tpu.dot_dimension_numbers<[1], [0], [0], [1], [0, 0, 1, 1], [], []>} : vector<8x32xf32>, vector<32x192xf32>, vector<8x192xf32> -> vector<8x192xf32>
    %cst_35 = arith.constant dense<0.000000e+00> : vector<8x96xf32>
    %144 = tpu.matmul %141, %2, %cst_35 {dimension_numbers = #tpu.dot_dimension_numbers<[1], [0], [0], [1], [0, 0, 1, 1], [], []>} : vector<8x32xf32>, vector<32x96xf32>, vector<8x96xf32> -> vector<8x96xf32>
    %145 = vector.extract_strided_slice %143 {offsets = [0, 0], sizes = [8, 96], strides = [1, 1]} : vector<8x192xf32> to vector<8x96xf32>
    %146 = vector.extract_strided_slice %143 {offsets = [0, 96], sizes = [8, 96], strides = [1, 1]} : vector<8x192xf32> to vector<8x96xf32>
    %147 = arith.addf %146, %13 : vector<8x96xf32>
    %148 = vector.extract_strided_slice %23 {offsets = [24, 0], sizes = [8, 96], strides = [1, 1]} : vector<64x96xf32> to vector<8x96xf32>
    %149 = arith.addf %148, %145 : vector<8x96xf32>
    %150 = vector.extract_strided_slice %149 {offsets = [0, 0], sizes = [8, 64], strides = [1, 1]} : vector<8x96xf32> to vector<8x64xf32>
    %151 = arith.negf %150 : vector<8x64xf32>
    %152 = math.exp %151 : vector<8x64xf32>
    %cst_36 = arith.constant 1.000000e+00 : f32
    %153 = vector.broadcast %cst_36 : f32 to vector<8x64xf32>
    %154 = arith.addf %153, %152 : vector<8x64xf32>
    %155 = arith.divf %153, %154 : vector<8x64xf32>
    %156 = vector.extract_strided_slice %155 {offsets = [0, 0], sizes = [8, 32], strides = [1, 1]} : vector<8x64xf32> to vector<8x32xf32>
    %157 = vector.extract_strided_slice %155 {offsets = [0, 32], sizes = [8, 32], strides = [1, 1]} : vector<8x64xf32> to vector<8x32xf32>
    %158 = vector.extract_strided_slice %148 {offsets = [0, 64], sizes = [8, 32], strides = [1, 1]} : vector<8x96xf32> to vector<8x32xf32>
    %159 = vector.extract_strided_slice %145 {offsets = [0, 64], sizes = [8, 32], strides = [1, 1]} : vector<8x96xf32> to vector<8x32xf32>
    %160 = arith.addf %159, %10 : vector<8x32xf32>
    %161 = arith.mulf %156, %160 : vector<8x32xf32>
    %162 = arith.addf %158, %161 : vector<8x32xf32>
    %163 = math.tanh %162 : vector<8x32xf32>
    %cst_37 = arith.constant 1.000000e+00 : f32
    %164 = vector.broadcast %cst_37 : f32 to vector<8x32xf32>
    %165 = arith.subf %164, %157 : vector<8x32xf32>
    %166 = arith.mulf %165, %163 : vector<8x32xf32>
    %167 = arith.mulf %157, %121 : vector<8x32xf32>
    %168 = arith.addf %166, %167 : vector<8x32xf32>
    %169 = arith.addf %147, %144 : vector<8x96xf32>
    %170 = vector.extract_strided_slice %169 {offsets = [0, 0], sizes = [8, 64], strides = [1, 1]} : vector<8x96xf32> to vector<8x64xf32>
    %171 = arith.negf %170 : vector<8x64xf32>
    %172 = math.exp %171 : vector<8x64xf32>
    %cst_38 = arith.constant 1.000000e+00 : f32
    %173 = vector.broadcast %cst_38 : f32 to vector<8x64xf32>
    %174 = arith.addf %173, %172 : vector<8x64xf32>
    %175 = arith.divf %173, %174 : vector<8x64xf32>
    %176 = vector.extract_strided_slice %175 {offsets = [0, 0], sizes = [8, 32], strides = [1, 1]} : vector<8x64xf32> to vector<8x32xf32>
    %177 = vector.extract_strided_slice %175 {offsets = [0, 32], sizes = [8, 32], strides = [1, 1]} : vector<8x64xf32> to vector<8x32xf32>
    %178 = vector.extract_strided_slice %147 {offsets = [0, 64], sizes = [8, 32], strides = [1, 1]} : vector<8x96xf32> to vector<8x32xf32>
    %179 = vector.extract_strided_slice %144 {offsets = [0, 64], sizes = [8, 32], strides = [1, 1]} : vector<8x96xf32> to vector<8x32xf32>
    %180 = arith.addf %179, %16 : vector<8x32xf32>
    %181 = arith.mulf %176, %180 : vector<8x32xf32>
    %182 = arith.addf %178, %181 : vector<8x32xf32>
    %183 = math.tanh %182 : vector<8x32xf32>
    %cst_39 = arith.constant 1.000000e+00 : f32
    %184 = vector.broadcast %cst_39 : f32 to vector<8x32xf32>
    %185 = arith.subf %184, %177 : vector<8x32xf32>
    %186 = arith.mulf %185, %183 : vector<8x32xf32>
    %187 = arith.mulf %177, %141 : vector<8x32xf32>
    %188 = arith.addf %186, %187 : vector<8x32xf32>
    %189 = arith.addf %142, %188 : vector<8x32xf32>
    %cst_40 = arith.constant dense<0.000000e+00> : vector<8x192xf32>
    %190 = tpu.matmul %168, %1, %cst_40 {dimension_numbers = #tpu.dot_dimension_numbers<[1], [0], [0], [1], [0, 0, 1, 1], [], []>} : vector<8x32xf32>, vector<32x192xf32>, vector<8x192xf32> -> vector<8x192xf32>
    %cst_41 = arith.constant dense<0.000000e+00> : vector<8x96xf32>
    %191 = tpu.matmul %188, %2, %cst_41 {dimension_numbers = #tpu.dot_dimension_numbers<[1], [0], [0], [1], [0, 0, 1, 1], [], []>} : vector<8x32xf32>, vector<32x96xf32>, vector<8x96xf32> -> vector<8x96xf32>
    %192 = vector.extract_strided_slice %190 {offsets = [0, 0], sizes = [8, 96], strides = [1, 1]} : vector<8x192xf32> to vector<8x96xf32>
    %193 = vector.extract_strided_slice %190 {offsets = [0, 96], sizes = [8, 96], strides = [1, 1]} : vector<8x192xf32> to vector<8x96xf32>
    %194 = arith.addf %193, %13 : vector<8x96xf32>
    %195 = vector.extract_strided_slice %23 {offsets = [32, 0], sizes = [8, 96], strides = [1, 1]} : vector<64x96xf32> to vector<8x96xf32>
    %196 = arith.addf %195, %192 : vector<8x96xf32>
    %197 = vector.extract_strided_slice %196 {offsets = [0, 0], sizes = [8, 64], strides = [1, 1]} : vector<8x96xf32> to vector<8x64xf32>
    %198 = arith.negf %197 : vector<8x64xf32>
    %199 = math.exp %198 : vector<8x64xf32>
    %cst_42 = arith.constant 1.000000e+00 : f32
    %200 = vector.broadcast %cst_42 : f32 to vector<8x64xf32>
    %201 = arith.addf %200, %199 : vector<8x64xf32>
    %202 = arith.divf %200, %201 : vector<8x64xf32>
    %203 = vector.extract_strided_slice %202 {offsets = [0, 0], sizes = [8, 32], strides = [1, 1]} : vector<8x64xf32> to vector<8x32xf32>
    %204 = vector.extract_strided_slice %202 {offsets = [0, 32], sizes = [8, 32], strides = [1, 1]} : vector<8x64xf32> to vector<8x32xf32>
    %205 = vector.extract_strided_slice %195 {offsets = [0, 64], sizes = [8, 32], strides = [1, 1]} : vector<8x96xf32> to vector<8x32xf32>
    %206 = vector.extract_strided_slice %192 {offsets = [0, 64], sizes = [8, 32], strides = [1, 1]} : vector<8x96xf32> to vector<8x32xf32>
    %207 = arith.addf %206, %10 : vector<8x32xf32>
    %208 = arith.mulf %203, %207 : vector<8x32xf32>
    %209 = arith.addf %205, %208 : vector<8x32xf32>
    %210 = math.tanh %209 : vector<8x32xf32>
    %cst_43 = arith.constant 1.000000e+00 : f32
    %211 = vector.broadcast %cst_43 : f32 to vector<8x32xf32>
    %212 = arith.subf %211, %204 : vector<8x32xf32>
    %213 = arith.mulf %212, %210 : vector<8x32xf32>
    %214 = arith.mulf %204, %168 : vector<8x32xf32>
    %215 = arith.addf %213, %214 : vector<8x32xf32>
    %216 = arith.addf %194, %191 : vector<8x96xf32>
    %217 = vector.extract_strided_slice %216 {offsets = [0, 0], sizes = [8, 64], strides = [1, 1]} : vector<8x96xf32> to vector<8x64xf32>
    %218 = arith.negf %217 : vector<8x64xf32>
    %219 = math.exp %218 : vector<8x64xf32>
    %cst_44 = arith.constant 1.000000e+00 : f32
    %220 = vector.broadcast %cst_44 : f32 to vector<8x64xf32>
    %221 = arith.addf %220, %219 : vector<8x64xf32>
    %222 = arith.divf %220, %221 : vector<8x64xf32>
    %223 = vector.extract_strided_slice %222 {offsets = [0, 0], sizes = [8, 32], strides = [1, 1]} : vector<8x64xf32> to vector<8x32xf32>
    %224 = vector.extract_strided_slice %222 {offsets = [0, 32], sizes = [8, 32], strides = [1, 1]} : vector<8x64xf32> to vector<8x32xf32>
    %225 = vector.extract_strided_slice %194 {offsets = [0, 64], sizes = [8, 32], strides = [1, 1]} : vector<8x96xf32> to vector<8x32xf32>
    %226 = vector.extract_strided_slice %191 {offsets = [0, 64], sizes = [8, 32], strides = [1, 1]} : vector<8x96xf32> to vector<8x32xf32>
    %227 = arith.addf %226, %16 : vector<8x32xf32>
    %228 = arith.mulf %223, %227 : vector<8x32xf32>
    %229 = arith.addf %225, %228 : vector<8x32xf32>
    %230 = math.tanh %229 : vector<8x32xf32>
    %cst_45 = arith.constant 1.000000e+00 : f32
    %231 = vector.broadcast %cst_45 : f32 to vector<8x32xf32>
    %232 = arith.subf %231, %224 : vector<8x32xf32>
    %233 = arith.mulf %232, %230 : vector<8x32xf32>
    %234 = arith.mulf %224, %188 : vector<8x32xf32>
    %235 = arith.addf %233, %234 : vector<8x32xf32>
    %236 = arith.addf %189, %235 : vector<8x32xf32>
    %cst_46 = arith.constant dense<0.000000e+00> : vector<8x192xf32>
    %237 = tpu.matmul %215, %1, %cst_46 {dimension_numbers = #tpu.dot_dimension_numbers<[1], [0], [0], [1], [0, 0, 1, 1], [], []>} : vector<8x32xf32>, vector<32x192xf32>, vector<8x192xf32> -> vector<8x192xf32>
    %cst_47 = arith.constant dense<0.000000e+00> : vector<8x96xf32>
    %238 = tpu.matmul %235, %2, %cst_47 {dimension_numbers = #tpu.dot_dimension_numbers<[1], [0], [0], [1], [0, 0, 1, 1], [], []>} : vector<8x32xf32>, vector<32x96xf32>, vector<8x96xf32> -> vector<8x96xf32>
    %239 = vector.extract_strided_slice %237 {offsets = [0, 0], sizes = [8, 96], strides = [1, 1]} : vector<8x192xf32> to vector<8x96xf32>
    %240 = vector.extract_strided_slice %237 {offsets = [0, 96], sizes = [8, 96], strides = [1, 1]} : vector<8x192xf32> to vector<8x96xf32>
    %241 = arith.addf %240, %13 : vector<8x96xf32>
    %242 = vector.extract_strided_slice %23 {offsets = [40, 0], sizes = [8, 96], strides = [1, 1]} : vector<64x96xf32> to vector<8x96xf32>
    %243 = arith.addf %242, %239 : vector<8x96xf32>
    %244 = vector.extract_strided_slice %243 {offsets = [0, 0], sizes = [8, 64], strides = [1, 1]} : vector<8x96xf32> to vector<8x64xf32>
    %245 = arith.negf %244 : vector<8x64xf32>
    %246 = math.exp %245 : vector<8x64xf32>
    %cst_48 = arith.constant 1.000000e+00 : f32
    %247 = vector.broadcast %cst_48 : f32 to vector<8x64xf32>
    %248 = arith.addf %247, %246 : vector<8x64xf32>
    %249 = arith.divf %247, %248 : vector<8x64xf32>
    %250 = vector.extract_strided_slice %249 {offsets = [0, 0], sizes = [8, 32], strides = [1, 1]} : vector<8x64xf32> to vector<8x32xf32>
    %251 = vector.extract_strided_slice %249 {offsets = [0, 32], sizes = [8, 32], strides = [1, 1]} : vector<8x64xf32> to vector<8x32xf32>
    %252 = vector.extract_strided_slice %242 {offsets = [0, 64], sizes = [8, 32], strides = [1, 1]} : vector<8x96xf32> to vector<8x32xf32>
    %253 = vector.extract_strided_slice %239 {offsets = [0, 64], sizes = [8, 32], strides = [1, 1]} : vector<8x96xf32> to vector<8x32xf32>
    %254 = arith.addf %253, %10 : vector<8x32xf32>
    %255 = arith.mulf %250, %254 : vector<8x32xf32>
    %256 = arith.addf %252, %255 : vector<8x32xf32>
    %257 = math.tanh %256 : vector<8x32xf32>
    %cst_49 = arith.constant 1.000000e+00 : f32
    %258 = vector.broadcast %cst_49 : f32 to vector<8x32xf32>
    %259 = arith.subf %258, %251 : vector<8x32xf32>
    %260 = arith.mulf %259, %257 : vector<8x32xf32>
    %261 = arith.mulf %251, %215 : vector<8x32xf32>
    %262 = arith.addf %260, %261 : vector<8x32xf32>
    %263 = arith.addf %241, %238 : vector<8x96xf32>
    %264 = vector.extract_strided_slice %263 {offsets = [0, 0], sizes = [8, 64], strides = [1, 1]} : vector<8x96xf32> to vector<8x64xf32>
    %265 = arith.negf %264 : vector<8x64xf32>
    %266 = math.exp %265 : vector<8x64xf32>
    %cst_50 = arith.constant 1.000000e+00 : f32
    %267 = vector.broadcast %cst_50 : f32 to vector<8x64xf32>
    %268 = arith.addf %267, %266 : vector<8x64xf32>
    %269 = arith.divf %267, %268 : vector<8x64xf32>
    %270 = vector.extract_strided_slice %269 {offsets = [0, 0], sizes = [8, 32], strides = [1, 1]} : vector<8x64xf32> to vector<8x32xf32>
    %271 = vector.extract_strided_slice %269 {offsets = [0, 32], sizes = [8, 32], strides = [1, 1]} : vector<8x64xf32> to vector<8x32xf32>
    %272 = vector.extract_strided_slice %241 {offsets = [0, 64], sizes = [8, 32], strides = [1, 1]} : vector<8x96xf32> to vector<8x32xf32>
    %273 = vector.extract_strided_slice %238 {offsets = [0, 64], sizes = [8, 32], strides = [1, 1]} : vector<8x96xf32> to vector<8x32xf32>
    %274 = arith.addf %273, %16 : vector<8x32xf32>
    %275 = arith.mulf %270, %274 : vector<8x32xf32>
    %276 = arith.addf %272, %275 : vector<8x32xf32>
    %277 = math.tanh %276 : vector<8x32xf32>
    %cst_51 = arith.constant 1.000000e+00 : f32
    %278 = vector.broadcast %cst_51 : f32 to vector<8x32xf32>
    %279 = arith.subf %278, %271 : vector<8x32xf32>
    %280 = arith.mulf %279, %277 : vector<8x32xf32>
    %281 = arith.mulf %271, %235 : vector<8x32xf32>
    %282 = arith.addf %280, %281 : vector<8x32xf32>
    %283 = arith.addf %236, %282 : vector<8x32xf32>
    %cst_52 = arith.constant dense<0.000000e+00> : vector<8x192xf32>
    %284 = tpu.matmul %262, %1, %cst_52 {dimension_numbers = #tpu.dot_dimension_numbers<[1], [0], [0], [1], [0, 0, 1, 1], [], []>} : vector<8x32xf32>, vector<32x192xf32>, vector<8x192xf32> -> vector<8x192xf32>
    %cst_53 = arith.constant dense<0.000000e+00> : vector<8x96xf32>
    %285 = tpu.matmul %282, %2, %cst_53 {dimension_numbers = #tpu.dot_dimension_numbers<[1], [0], [0], [1], [0, 0, 1, 1], [], []>} : vector<8x32xf32>, vector<32x96xf32>, vector<8x96xf32> -> vector<8x96xf32>
    %286 = vector.extract_strided_slice %284 {offsets = [0, 0], sizes = [8, 96], strides = [1, 1]} : vector<8x192xf32> to vector<8x96xf32>
    %287 = vector.extract_strided_slice %284 {offsets = [0, 96], sizes = [8, 96], strides = [1, 1]} : vector<8x192xf32> to vector<8x96xf32>
    %288 = arith.addf %287, %13 : vector<8x96xf32>
    %289 = vector.extract_strided_slice %23 {offsets = [48, 0], sizes = [8, 96], strides = [1, 1]} : vector<64x96xf32> to vector<8x96xf32>
    %290 = arith.addf %289, %286 : vector<8x96xf32>
    %291 = vector.extract_strided_slice %290 {offsets = [0, 0], sizes = [8, 64], strides = [1, 1]} : vector<8x96xf32> to vector<8x64xf32>
    %292 = arith.negf %291 : vector<8x64xf32>
    %293 = math.exp %292 : vector<8x64xf32>
    %cst_54 = arith.constant 1.000000e+00 : f32
    %294 = vector.broadcast %cst_54 : f32 to vector<8x64xf32>
    %295 = arith.addf %294, %293 : vector<8x64xf32>
    %296 = arith.divf %294, %295 : vector<8x64xf32>
    %297 = vector.extract_strided_slice %296 {offsets = [0, 0], sizes = [8, 32], strides = [1, 1]} : vector<8x64xf32> to vector<8x32xf32>
    %298 = vector.extract_strided_slice %296 {offsets = [0, 32], sizes = [8, 32], strides = [1, 1]} : vector<8x64xf32> to vector<8x32xf32>
    %299 = vector.extract_strided_slice %289 {offsets = [0, 64], sizes = [8, 32], strides = [1, 1]} : vector<8x96xf32> to vector<8x32xf32>
    %300 = vector.extract_strided_slice %286 {offsets = [0, 64], sizes = [8, 32], strides = [1, 1]} : vector<8x96xf32> to vector<8x32xf32>
    %301 = arith.addf %300, %10 : vector<8x32xf32>
    %302 = arith.mulf %297, %301 : vector<8x32xf32>
    %303 = arith.addf %299, %302 : vector<8x32xf32>
    %304 = math.tanh %303 : vector<8x32xf32>
    %cst_55 = arith.constant 1.000000e+00 : f32
    %305 = vector.broadcast %cst_55 : f32 to vector<8x32xf32>
    %306 = arith.subf %305, %298 : vector<8x32xf32>
    %307 = arith.mulf %306, %304 : vector<8x32xf32>
    %308 = arith.mulf %298, %262 : vector<8x32xf32>
    %309 = arith.addf %307, %308 : vector<8x32xf32>
    %310 = arith.addf %288, %285 : vector<8x96xf32>
    %311 = vector.extract_strided_slice %310 {offsets = [0, 0], sizes = [8, 64], strides = [1, 1]} : vector<8x96xf32> to vector<8x64xf32>
    %312 = arith.negf %311 : vector<8x64xf32>
    %313 = math.exp %312 : vector<8x64xf32>
    %cst_56 = arith.constant 1.000000e+00 : f32
    %314 = vector.broadcast %cst_56 : f32 to vector<8x64xf32>
    %315 = arith.addf %314, %313 : vector<8x64xf32>
    %316 = arith.divf %314, %315 : vector<8x64xf32>
    %317 = vector.extract_strided_slice %316 {offsets = [0, 0], sizes = [8, 32], strides = [1, 1]} : vector<8x64xf32> to vector<8x32xf32>
    %318 = vector.extract_strided_slice %316 {offsets = [0, 32], sizes = [8, 32], strides = [1, 1]} : vector<8x64xf32> to vector<8x32xf32>
    %319 = vector.extract_strided_slice %288 {offsets = [0, 64], sizes = [8, 32], strides = [1, 1]} : vector<8x96xf32> to vector<8x32xf32>
    %320 = vector.extract_strided_slice %285 {offsets = [0, 64], sizes = [8, 32], strides = [1, 1]} : vector<8x96xf32> to vector<8x32xf32>
    %321 = arith.addf %320, %16 : vector<8x32xf32>
    %322 = arith.mulf %317, %321 : vector<8x32xf32>
    %323 = arith.addf %319, %322 : vector<8x32xf32>
    %324 = math.tanh %323 : vector<8x32xf32>
    %cst_57 = arith.constant 1.000000e+00 : f32
    %325 = vector.broadcast %cst_57 : f32 to vector<8x32xf32>
    %326 = arith.subf %325, %318 : vector<8x32xf32>
    %327 = arith.mulf %326, %324 : vector<8x32xf32>
    %328 = arith.mulf %318, %282 : vector<8x32xf32>
    %329 = arith.addf %327, %328 : vector<8x32xf32>
    %330 = arith.addf %283, %329 : vector<8x32xf32>
    %cst_58 = arith.constant dense<0.000000e+00> : vector<8x192xf32>
    %331 = tpu.matmul %309, %1, %cst_58 {dimension_numbers = #tpu.dot_dimension_numbers<[1], [0], [0], [1], [0, 0, 1, 1], [], []>} : vector<8x32xf32>, vector<32x192xf32>, vector<8x192xf32> -> vector<8x192xf32>
    %cst_59 = arith.constant dense<0.000000e+00> : vector<8x96xf32>
    %332 = tpu.matmul %329, %2, %cst_59 {dimension_numbers = #tpu.dot_dimension_numbers<[1], [0], [0], [1], [0, 0, 1, 1], [], []>} : vector<8x32xf32>, vector<32x96xf32>, vector<8x96xf32> -> vector<8x96xf32>
    %333 = vector.extract_strided_slice %331 {offsets = [0, 0], sizes = [8, 96], strides = [1, 1]} : vector<8x192xf32> to vector<8x96xf32>
    %334 = vector.extract_strided_slice %331 {offsets = [0, 96], sizes = [8, 96], strides = [1, 1]} : vector<8x192xf32> to vector<8x96xf32>
    %335 = arith.addf %334, %13 : vector<8x96xf32>
    %336 = vector.extract_strided_slice %23 {offsets = [56, 0], sizes = [8, 96], strides = [1, 1]} : vector<64x96xf32> to vector<8x96xf32>
    %337 = arith.addf %336, %333 : vector<8x96xf32>
    %338 = vector.extract_strided_slice %337 {offsets = [0, 0], sizes = [8, 64], strides = [1, 1]} : vector<8x96xf32> to vector<8x64xf32>
    %339 = arith.negf %338 : vector<8x64xf32>
    %340 = math.exp %339 : vector<8x64xf32>
    %cst_60 = arith.constant 1.000000e+00 : f32
    %341 = vector.broadcast %cst_60 : f32 to vector<8x64xf32>
    %342 = arith.addf %341, %340 : vector<8x64xf32>
    %343 = arith.divf %341, %342 : vector<8x64xf32>
    %344 = vector.extract_strided_slice %343 {offsets = [0, 0], sizes = [8, 32], strides = [1, 1]} : vector<8x64xf32> to vector<8x32xf32>
    %345 = vector.extract_strided_slice %343 {offsets = [0, 32], sizes = [8, 32], strides = [1, 1]} : vector<8x64xf32> to vector<8x32xf32>
    %346 = vector.extract_strided_slice %336 {offsets = [0, 64], sizes = [8, 32], strides = [1, 1]} : vector<8x96xf32> to vector<8x32xf32>
    %347 = vector.extract_strided_slice %333 {offsets = [0, 64], sizes = [8, 32], strides = [1, 1]} : vector<8x96xf32> to vector<8x32xf32>
    %348 = arith.addf %347, %10 : vector<8x32xf32>
    %349 = arith.mulf %344, %348 : vector<8x32xf32>
    %350 = arith.addf %346, %349 : vector<8x32xf32>
    %351 = math.tanh %350 : vector<8x32xf32>
    %cst_61 = arith.constant 1.000000e+00 : f32
    %352 = vector.broadcast %cst_61 : f32 to vector<8x32xf32>
    %353 = arith.subf %352, %345 : vector<8x32xf32>
    %354 = arith.mulf %353, %351 : vector<8x32xf32>
    %355 = arith.mulf %345, %309 : vector<8x32xf32>
    %356 = arith.addf %354, %355 : vector<8x32xf32>
    %357 = arith.addf %335, %332 : vector<8x96xf32>
    %358 = vector.extract_strided_slice %357 {offsets = [0, 0], sizes = [8, 64], strides = [1, 1]} : vector<8x96xf32> to vector<8x64xf32>
    %359 = arith.negf %358 : vector<8x64xf32>
    %360 = math.exp %359 : vector<8x64xf32>
    %cst_62 = arith.constant 1.000000e+00 : f32
    %361 = vector.broadcast %cst_62 : f32 to vector<8x64xf32>
    %362 = arith.addf %361, %360 : vector<8x64xf32>
    %363 = arith.divf %361, %362 : vector<8x64xf32>
    %364 = vector.extract_strided_slice %363 {offsets = [0, 0], sizes = [8, 32], strides = [1, 1]} : vector<8x64xf32> to vector<8x32xf32>
    %365 = vector.extract_strided_slice %363 {offsets = [0, 32], sizes = [8, 32], strides = [1, 1]} : vector<8x64xf32> to vector<8x32xf32>
    %366 = vector.extract_strided_slice %335 {offsets = [0, 64], sizes = [8, 32], strides = [1, 1]} : vector<8x96xf32> to vector<8x32xf32>
    %367 = vector.extract_strided_slice %332 {offsets = [0, 64], sizes = [8, 32], strides = [1, 1]} : vector<8x96xf32> to vector<8x32xf32>
    %368 = arith.addf %367, %16 : vector<8x32xf32>
    %369 = arith.mulf %364, %368 : vector<8x32xf32>
    %370 = arith.addf %366, %369 : vector<8x32xf32>
    %371 = math.tanh %370 : vector<8x32xf32>
    %cst_63 = arith.constant 1.000000e+00 : f32
    %372 = vector.broadcast %cst_63 : f32 to vector<8x32xf32>
    %373 = arith.subf %372, %365 : vector<8x32xf32>
    %374 = arith.mulf %373, %371 : vector<8x32xf32>
    %375 = arith.mulf %365, %329 : vector<8x32xf32>
    %376 = arith.addf %374, %375 : vector<8x32xf32>
    %377 = arith.addf %330, %376 : vector<8x32xf32>
    %cst_64 = arith.constant dense<0.000000e+00> : vector<8x192xf32>
    %378 = tpu.matmul %356, %1, %cst_64 {dimension_numbers = #tpu.dot_dimension_numbers<[1], [0], [0], [1], [0, 0, 1, 1], [], []>} : vector<8x32xf32>, vector<32x192xf32>, vector<8x192xf32> -> vector<8x192xf32>
    %cst_65 = arith.constant dense<0.000000e+00> : vector<8x96xf32>
    %379 = tpu.matmul %376, %2, %cst_65 {dimension_numbers = #tpu.dot_dimension_numbers<[1], [0], [0], [1], [0, 0, 1, 1], [], []>} : vector<8x32xf32>, vector<32x96xf32>, vector<8x96xf32> -> vector<8x96xf32>
    %380 = vector.extract_strided_slice %378 {offsets = [0, 96], sizes = [8, 96], strides = [1, 1]} : vector<8x192xf32> to vector<8x96xf32>
    %381 = arith.addf %380, %13 : vector<8x96xf32>
    %382 = arith.addf %381, %379 : vector<8x96xf32>
    %383 = vector.extract_strided_slice %382 {offsets = [0, 0], sizes = [8, 64], strides = [1, 1]} : vector<8x96xf32> to vector<8x64xf32>
    %384 = arith.negf %383 : vector<8x64xf32>
    %385 = math.exp %384 : vector<8x64xf32>
    %cst_66 = arith.constant 1.000000e+00 : f32
    %386 = vector.broadcast %cst_66 : f32 to vector<8x64xf32>
    %387 = arith.addf %386, %385 : vector<8x64xf32>
    %388 = arith.divf %386, %387 : vector<8x64xf32>
    %389 = vector.extract_strided_slice %388 {offsets = [0, 0], sizes = [8, 32], strides = [1, 1]} : vector<8x64xf32> to vector<8x32xf32>
    %390 = vector.extract_strided_slice %388 {offsets = [0, 32], sizes = [8, 32], strides = [1, 1]} : vector<8x64xf32> to vector<8x32xf32>
    %391 = vector.extract_strided_slice %381 {offsets = [0, 64], sizes = [8, 32], strides = [1, 1]} : vector<8x96xf32> to vector<8x32xf32>
    %392 = vector.extract_strided_slice %379 {offsets = [0, 64], sizes = [8, 32], strides = [1, 1]} : vector<8x96xf32> to vector<8x32xf32>
    %393 = arith.addf %392, %16 : vector<8x32xf32>
    %394 = arith.mulf %389, %393 : vector<8x32xf32>
    %395 = arith.addf %391, %394 : vector<8x32xf32>
    %396 = math.tanh %395 : vector<8x32xf32>
    %cst_67 = arith.constant 1.000000e+00 : f32
    %397 = vector.broadcast %cst_67 : f32 to vector<8x32xf32>
    %398 = arith.subf %397, %390 : vector<8x32xf32>
    %399 = arith.mulf %398, %396 : vector<8x32xf32>
    %400 = arith.mulf %390, %376 : vector<8x32xf32>
    %401 = arith.addf %399, %400 : vector<8x32xf32>
    %402 = arith.addf %377, %401 : vector<8x32xf32>
    %403 = vector.extract_strided_slice %402 {offsets = [0, 0], sizes = [2, 32], strides = [1, 1]} : vector<8x32xf32> to vector<2x32xf32>
    %404 = vector.extract_strided_slice %402 {offsets = [2, 0], sizes = [2, 32], strides = [1, 1]} : vector<8x32xf32> to vector<2x32xf32>
    %cst_68 = arith.constant dense<0.000000e+00> : vector<2x32xf32>
    %405 = tpu.matmul %403, %3, %cst_68 {dimension_numbers = #tpu.dot_dimension_numbers<[1], [0], [0], [1], [0, 0, 1, 1], [], []>} : vector<2x32xf32>, vector<32x32xf32>, vector<2x32xf32> -> vector<2x32xf32>
    %cst_69 = arith.constant dense<0.000000e+00> : vector<2x32xf32>
    %406 = tpu.matmul %404, %4, %cst_69 {dimension_numbers = #tpu.dot_dimension_numbers<[1], [0], [0], [1], [0, 0, 1, 1], [], []>} : vector<2x32xf32>, vector<32x32xf32>, vector<2x32xf32> -> vector<2x32xf32>
    %407 = arith.addf %405, %406 : vector<2x32xf32>
    %408 = vector.broadcast %17 : vector<1x32xf32> to vector<2x32xf32>
    %409 = arith.addf %407, %408 : vector<2x32xf32>
    %cst_70 = arith.constant 5.000000e-01 : f32
    %410 = vector.broadcast %cst_70 : f32 to vector<2x32xf32>
    %411 = arith.mulf %410, %409 : vector<2x32xf32>
    %cst_71 = arith.constant 0.707106769 : f32
    %412 = vector.broadcast %cst_71 : f32 to vector<2x32xf32>
    %413 = arith.mulf %409, %412 : vector<2x32xf32>
    %cst_72 = arith.constant 0.000000e+00 : f32
    %414 = vector.broadcast %cst_72 : f32 to vector<2x32xf32>
    %415 = arith.cmpf oge, %413, %414 : vector<2x32xf32>
    %cst_73 = arith.constant 1.000000e+00 : f32
    %cst_74 = arith.constant -1.000000e+00 : f32
    %416 = vector.broadcast %cst_73 : f32 to vector<2x32xf32>
    %417 = vector.broadcast %cst_74 : f32 to vector<2x32xf32>
    %418 = arith.select %415, %416, %417 : vector<2x32xi1>, vector<2x32xf32>
    %419 = math.absf %413 : vector<2x32xf32>
    %cst_75 = arith.constant 0.327591091 : f32
    %420 = vector.broadcast %cst_75 : f32 to vector<2x32xf32>
    %421 = arith.mulf %420, %419 : vector<2x32xf32>
    %cst_76 = arith.constant 1.000000e+00 : f32
    %422 = vector.broadcast %cst_76 : f32 to vector<2x32xf32>
    %423 = arith.addf %422, %421 : vector<2x32xf32>
    %cst_77 = arith.constant 1.000000e+00 : f32
    %424 = vector.broadcast %cst_77 : f32 to vector<2x32xf32>
    %425 = arith.divf %424, %423 : vector<2x32xf32>
    %cst_78 = arith.constant 1.06140542 : f32
    %426 = vector.broadcast %cst_78 : f32 to vector<2x32xf32>
    %427 = arith.mulf %426, %425 : vector<2x32xf32>
    %cst_79 = arith.constant -1.45315206 : f32
    %428 = vector.broadcast %cst_79 : f32 to vector<2x32xf32>
    %429 = arith.addf %427, %428 : vector<2x32xf32>
    %430 = arith.mulf %429, %425 : vector<2x32xf32>
    %cst_80 = arith.constant 1.42141378 : f32
    %431 = vector.broadcast %cst_80 : f32 to vector<2x32xf32>
    %432 = arith.addf %430, %431 : vector<2x32xf32>
    %433 = arith.mulf %432, %425 : vector<2x32xf32>
    %cst_81 = arith.constant -0.284496725 : f32
    %434 = vector.broadcast %cst_81 : f32 to vector<2x32xf32>
    %435 = arith.addf %433, %434 : vector<2x32xf32>
    %436 = arith.mulf %435, %425 : vector<2x32xf32>
    %cst_82 = arith.constant 0.254829586 : f32
    %437 = vector.broadcast %cst_82 : f32 to vector<2x32xf32>
    %438 = arith.addf %436, %437 : vector<2x32xf32>
    %439 = arith.mulf %438, %425 : vector<2x32xf32>
    %cst_83 = arith.constant 0.000000e+00 : f32
    %440 = vector.broadcast %cst_83 : f32 to vector<2x32xf32>
    %441 = arith.subf %440, %419 : vector<2x32xf32>
    %442 = arith.mulf %441, %419 : vector<2x32xf32>
    %443 = math.exp %442 : vector<2x32xf32>
    %444 = arith.mulf %439, %443 : vector<2x32xf32>
    %cst_84 = arith.constant 1.000000e+00 : f32
    %445 = vector.broadcast %cst_84 : f32 to vector<2x32xf32>
    %446 = arith.subf %445, %444 : vector<2x32xf32>
    %447 = arith.mulf %418, %446 : vector<2x32xf32>
    %cst_85 = arith.constant 1.000000e+00 : f32
    %448 = vector.broadcast %cst_85 : f32 to vector<2x32xf32>
    %449 = arith.addf %448, %447 : vector<2x32xf32>
    %450 = arith.mulf %411, %449 : vector<2x32xf32>
    %cst_86 = arith.constant dense<0.000000e+00> : vector<2x32xf32>
    %451 = tpu.matmul %450, %5, %cst_86 {dimension_numbers = #tpu.dot_dimension_numbers<[1], [0], [0], [1], [0, 0, 1, 1], [], []>} : vector<2x32xf32>, vector<32x32xf32>, vector<2x32xf32> -> vector<2x32xf32>
    %452 = vector.broadcast %18 : vector<1x32xf32> to vector<2x32xf32>
    %453 = arith.addf %451, %452 : vector<2x32xf32>
    %cst_87 = arith.constant 0.000000e+00 : f32
    %454 = vector.broadcast %cst_87 : f32 to vector<2x32xf32>
    %455 = arith.maximumf %453, %454 : vector<2x32xf32>
    %456 = arith.addf %450, %455 : vector<2x32xf32>
    %cst_88 = arith.constant dense<0.000000e+00> : vector<2x256xf32>
    %457 = tpu.matmul %456, %6, %cst_88 {dimension_numbers = #tpu.dot_dimension_numbers<[1], [0], [0], [1], [0, 0, 1, 1], [], []>} : vector<2x32xf32>, vector<32x256xf32>, vector<2x256xf32> -> vector<2x256xf32>
    %458 = vector.broadcast %19 : vector<1x256xf32> to vector<2x256xf32>
    %459 = arith.addf %457, %458 : vector<2x256xf32>
    %c0_89 = arith.constant 0 : index
    %c0_90 = arith.constant 0 : index
    %460 = vector.load %arg2[%c0_89, %c0_90] : memref<2x256xf32, #tpu.memory_space<vmem>>, vector<2x256xf32>
    tpu.vector_store %arg2[%c0_89, %c0_90], %459 {strides = array<i32>} : memref<2x256xf32, #tpu.memory_space<vmem>>, vector<2x256xf32>,
    return
  }
}

</mosaic_0001>

<llo_original>
// kernel: forward_logits.1
$region0: #{forward_logits.1}
  #allocation0 [shape = 'u32[]', space=smem, size = 0x4, offset = 0x4, fixed_abs, tag = 'smem constant byte address 0x4 - core index']
  #allocation1 [shape = 'u32[72,128]{1,0:T(1,128)}', space=vmem, size = 0x9000, scoped, tag = 'internal scratch']
  %s0 = inlined_call_operand.vmem [shape: f32[64,32], index: 0, kind: input, shape index: {}]
  %s1 = inlined_call_operand.hbm [shape: f32[280,256], index: 1, kind: input, shape index: {}]
  %s2 = inlined_call_operand.vmem [shape: f32[2,256], index: 2, kind: output, shape index: {}]
  %s3 = sld [smem:[#allocation0]]
  $region22: #{forward_logits.1} parent=0
    _
  %s5 = ssub.s32 1, %s3
  %s6 = scalar_select 0, %s5, %s3
  $region1: #{forward_logits.1} parent=0
    #allocation2 [shape = 'u8[286720]{0}', space=vmem, size = 0x46000, scoped, tag = 'input window, operand 1, single buffered']
    #allocation3 [shape = 's32[1]{0}', space=sflag, size = 0x4, scoped, tag = 'scoped memory for forward_logits.1']
    %7 = vsyncpa [#allocation3], 0
    // Predicated region
    $region2: #{forward_logits.1} parent=1 // pred_check
      _
    $region3: #{forward_logits.1} parent=1 // pred_check_branch
      %9 = sbr.rel (0) target = $region5
    $region4: #{forward_logits.1} parent=1 // pred_region
      _
    $region5: #{forward_logits.1} parent=1 // pred_fallthru
      _
    // Predicated region
    $region6: #{forward_logits.1} parent=1 // pred_check
      _
    $region7: #{forward_logits.1} parent=1 // pred_check_branch
      %11 = sbr.rel (0) target = $region9
    $region8: #{forward_logits.1} parent=1 // pred_region
      %13 = vsyncadd [#allocation3], 0
      %s14 = sshll.u32 %s1, 4
      %s15 = int_to_ptr.hbm [resolvable:$true] %s14
      %s16 = sshll.u32 [#allocation2], 4
      %s17 = int_to_ptr.vmem [resolvable:$true] %s16
      %22 = dma.hbm_to_vmem [thread:$0]  %s15, 8960, %s17, [#allocation3], 256, 256, 16
    $region9: #{forward_logits.1} parent=1 // pred_fallthru
      _
    // Predicated region
    $region10: #{forward_logits.1} parent=1 // pred_check
      _
    $region11: #{forward_logits.1} parent=1 // pred_check_branch
      %24 = sbr.rel (0) target = $region13
    $region12: #{forward_logits.1} parent=1 // pred_region
      %26 = dma.done [#allocation3], 8960
    $region13: #{forward_logits.1} parent=1 // pred_fallthru
      _
    %v27 = vld [vmem:[#allocation2] sm:$0xff]
    %v28 = vld [vmem:[#allocation2 + $0x10] sm:$0xff]
    %v29 = vld [vmem:[#allocation2 + $0x20] sm:$0xff]
    %v30 = vld [vmem:[#allocation2 + $0x30] sm:$0xff]
    %v31 = vld [vmem:[#allocation2 + $0x40] sm:$0xff]
    %v32 = vld [vmem:[#allocation2 + $0x48] sm:$0xff]
    %v33 = vld [vmem:[#allocation2 + $0x50] sm:$0xff]
    %v34 = vld [vmem:[#allocation2 + $0x58] sm:$0xff]
    %v35 = vld [vmem:[#allocation2 + $0x60] sm:$0xff]
    %v36 = vld [vmem:[#allocation2 + $0x68] sm:$0xff]
    %v37 = vld [vmem:[#allocation2 + $0x70] sm:$0xff]
    %v38 = vld [vmem:[#allocation2 + $0x78] sm:$0xff]
    %v39 = vld [vmem:[#allocation2 + $0x80] sm:$0xff]
    %v40 = vld [vmem:[#allocation2 + $0x90] sm:$0xff]
    %v41 = vld [vmem:[#allocation2 + $0xa0] sm:$0xff]
    %v42 = vld [vmem:[#allocation2 + $0xb0] sm:$0xff]
    %v43 = vld [vmem:[#allocation2 + $0xc0] sm:$0xff]
    %v44 = vld [vmem:[#allocation2 + $0xd0] sm:$0xff]
    %v45 = vld [vmem:[#allocation2 + $0xe0] sm:$0xff]
    %v46 = vld [vmem:[#allocation2 + $0xf0] sm:$0xff]
    %v47 = vld [vmem:[#allocation2 + $0x100] sm:$0xff]
    %v48 = vld [vmem:[#allocation2 + $0x110] sm:$0xff]
    %v49 = vld [vmem:[#allocation2 + $0x120] sm:$0xff]
    %v50 = vld [vmem:[#allocation2 + $0x130] sm:$0xff]
    %v51 = vld [vmem:[#allocation2 + $0x140] sm:$0xff]
    %v52 = vld [vmem:[#allocation2 + $0x150] sm:$0xff]
    %v53 = vld [vmem:[#allocation2 + $0x160] sm:$0xff]
    %v54 = vld [vmem:[#allocation2 + $0x170] sm:$0xff]
    %v55 = vld [vmem:[#allocation2 + $0x180] sm:$0xff]
    %v56 = vld [vmem:[#allocation2 + $0x188] sm:$0xff]
    %v57 = vld [vmem:[#allocation2 + $0x190] sm:$0xff]
    %v58 = vld [vmem:[#allocation2 + $0x198] sm:$0xff]
    %v59 = vld [vmem:[#allocation2 + $0x1a0] sm:$0xff]
    %v60 = vld [vmem:[#allocation2 + $0x1a8] sm:$0xff]
    %v61 = vld [vmem:[#allocation2 + $0x1b0] sm:$0xff]
    %v62 = vld [vmem:[#allocation2 + $0x1b8] sm:$0xff]
    %v63 = vld [vmem:[#allocation2 + $0x1c0] ss:$0 sm:$0xff]
    %v64 = vld [vmem:[#allocation2 + $0x1d0] ss:$0 sm:$0xff]
    %v65 = vld [vmem:[#allocation2 + $0x1e0] ss:$0 sm:$0xff]
    %v66 = vld [vmem:[#allocation2 + $0x1f0] ss:$0 sm:$0xff]
    %v67 = vld [vmem:[#allocation2 + $0x200] ss:$0 sm:$0xff]
    %v68 = vld [vmem:[#allocation2 + $0x210] ss:$0 sm:$0xff]
    %s69 = scalar_lea.vmem [#allocation2], 544
    %v70 = vld [vmem:[%s69] ss:$8 sm:$0x3]
    %v71 = vld [vmem:[%s0] sm:$0xff]
    %v72 = vld [vmem:[%s0 + $0x8] sm:$0xff]
    %v73 = vld [vmem:[%s0 + $0x10] sm:$0xff]
    %v74 = vld [vmem:[%s0 + $0x18] sm:$0xff]
    %v75 = vld [vmem:[%s0 + $0x20] sm:$0xff]
    %v76 = vld [vmem:[%s0 + $0x28] sm:$0xff]
    %v77 = vld [vmem:[%s0 + $0x30] sm:$0xff]
    %v78 = vld [vmem:[%s0 + $0x38] sm:$0xff]
    %vm79 = vcmask 261120
    %v81 = vsel %vm79, %v71, 0
    %v84 = vsel %vm79, %v72, 0
    %v87 = vsel %vm79, %v73, 0
    %v90 = vsel %vm79, %v74, 0
    %v93 = vsel %vm79, %v75, 0
    %v96 = vsel %vm79, %v76, 0
    %v99 = vsel %vm79, %v77, 0
    %v102 = vsel %vm79, %v78, 0
    %104 = vmatpush.msra.mxu0 0.0
    %105 = vmatpush.msra.mxu0 0.0
    %106 = vmatpush.msra.mxu0 0.0
    %107 = vmatpush.msra.mxu0 0.0
    %108 = vmatpush.msra.mxu0 0.0
    %109 = vmatpush.msra.mxu0 0.0
    %110 = vmatpush.msra.mxu0 0.0
    %111 = vmatpush.msra.mxu0 0.0
    %112 = vmatpush.msra.mxu0 0.0
    %113 = vmatpush.msra.mxu0 0.0
    %114 = vmatpush.msra.mxu0 0.0
    %115 = vmatpush.msra.mxu0 0.0
    %116 = vmatpush.msra.mxu0 %v30
    %117 = vmatpush.msra.mxu0 %v29
    %118 = vmatpush.msra.mxu0 %v28
    %119 = vmatpush.msra.mxu0 %v27
    %120 = vmatmul.f32.gmra.mxu0 %v81
    %v121 = vpop.f32.mrf.mxu0
    %v122 = vadd.f32 %v63, %v121
    %123 = vmatmul.f32.gmra.mxu0 %v84
    %v124 = vpop.f32.mrf.mxu0
    %v125 = vadd.f32 %v63, %v124
    %126 = vmatmul.f32.gmra.mxu0 %v87
    %v127 = vpop.f32.mrf.mxu0
    %v128 = vadd.f32 %v63, %v127
    %129 = vmatmul.f32.gmra.mxu0 %v90
    %v130 = vpop.f32.mrf.mxu0
    %v131 = vadd.f32 %v63, %v130
    %132 = vmatmul.f32.gmra.mxu0 %v93
    %v133 = vpop.f32.mrf.mxu0
    %v134 = vadd.f32 %v63, %v133
    %135 = vmatmul.f32.gmra.mxu0 %v96
    %v136 = vpop.f32.mrf.mxu0
    %v137 = vadd.f32 %v63, %v136
    %138 = vmatmul.f32.gmra.mxu0 %v99
    %v139 = vpop.f32.mrf.mxu0
    %v140 = vadd.f32 %v63, %v139
    %141 = vmatmul.f32.gmra.mxu0 %v102
    %v142 = vpop.f32.mrf.mxu0
    %v143 = vadd.f32 %v63, %v142
    %144 = vdwg.mxu0
    %v145 = vadd.f32 %v122, 0.0
    %v146 = vxor.u32 %v145, 2147483648
    %v147 = vmul.f32 %v146, 1.442695
    %v148 = vpow.pop %v147
    %v149 = vadd.f32 %v148, 1.0
    %v150 = vrcp.pop %v149
    %v151 = vmul.f32 %v149, %v150
    %v152 = vsub.f32 1.0, %v151
    %v153 = vmul.f32 %v150, %v152
    %v154 = vadd.f32 %v150, %v153
    %vm155 = vweird.f32 %v149
    %vm156 = vweird.f32 %v150
    %vm157 = vmor %vm155, %vm156
    %v158 = vsel %vm157, %v150, %v154
    %v159 = vand.u32 2147483647, %v149
    %vm160 = vcmp.eq.f32.partialorder %v159, 8.507059e+37
    %v161 = vand.u32 %v149, 2147483648
    %v162 = vor.u32 1.1754944e-38, %v161
    %v163 = vsel %vm160, %v162, %v158
    %v164 = vmul.f32 1.0, %v163
    %v165 = vadd.f32 %v64, 0.0
    %v166 = vmul.f32 %v164, %v165
    %168 = vrot.lane.b32.xlu0 %v166, 64
    %v169 = vpop.permute.xlu0 %168
    %v171 = vadd.f32 %v122, %v169
    %v172 = vtanh.pop %v171
    %v173 = vsub.f32 1.0, %v164
    %175 = vrot.lane.b32.xlu0 %v172, 96
    %v176 = vpop.permute.xlu0 %175
    %v178 = vmul.f32 %v173, %v176
    %v179 = vmul.f32 %v164, 0.0
    %v180 = vadd.f32 %v178, %v179
    %182 = vrot.lane.b32.xlu0 %v180, 96
    %v183 = vpop.permute.xlu0 %182
    %v184 = vsel %vm79, %v183, 0
    %186 = vmatpush.msra.mxu0 0.0
    %187 = vmatpush.msra.mxu0 0.0
    %188 = vmatpush.msra.mxu0 0.0
    %189 = vmatpush.msra.mxu0 0.0
    %190 = vmatpush.msra.mxu0 0.0
    %191 = vmatpush.msra.mxu0 0.0
    %192 = vmatpush.msra.mxu0 0.0
    %193 = vmatpush.msra.mxu0 0.0
    %194 = vmatpush.msra.mxu0 0.0
    %195 = vmatpush.msra.mxu0 0.0
    %196 = vmatpush.msra.mxu0 0.0
    %197 = vmatpush.msra.mxu0 0.0
    %198 = vmatpush.msra.mxu0 %v37
    %199 = vmatpush.msra.mxu0 %v35
    %200 = vmatpush.msra.mxu0 %v33
    %201 = vmatpush.msra.mxu0 %v31
    %202 = vmatmul.f32.gmra.mxu0 %v184
    %v203 = vpop.f32.mrf.mxu0
    %v204 = vadd.f32 0.0, %v203
    %205 = vdwg.mxu0
    %206 = vmatpush.msra.mxu0 0.0
    %207 = vmatpush.msra.mxu0 0.0
    %208 = vmatpush.msra.mxu0 0.0
    %209 = vmatpush.msra.mxu0 0.0
    %210 = vmatpush.msra.mxu0 0.0
    %211 = vmatpush.msra.mxu0 0.0
    %212 = vmatpush.msra.mxu0 0.0
    %213 = vmatpush.msra.mxu0 0.0
    %214 = vmatpush.msra.mxu0 0.0
    %215 = vmatpush.msra.mxu0 0.0
    %216 = vmatpush.msra.mxu0 0.0
    %217 = vmatpush.msra.mxu0 0.0
    %218 = vmatpush.msra.mxu0 %v38
    %219 = vmatpush.msra.mxu0 %v36
    %220 = vmatpush.msra.mxu0 %v34
    %221 = vmatpush.msra.mxu0 %v32
    %222 = vmatmul.f32.gmra.mxu0 %v184
    %v223 = vpop.f32.mrf.mxu0
    %v224 = vadd.f32 0.0, %v223
    %225 = vdwg.mxu0
    %v227 = vsel %vm79, 0.0, 0
    %229 = vmatpush.msra.mxu0 0.0
    %230 = vmatpush.msra.mxu0 0.0
    %231 = vmatpush.msra.mxu0 0.0
    %232 = vmatpush.msra.mxu0 0.0
    %233 = vmatpush.msra.mxu0 0.0
    %234 = vmatpush.msra.mxu0 0.0
    %235 = vmatpush.msra.mxu0 0.0
    %236 = vmatpush.msra.mxu0 0.0
    %237 = vmatpush.msra.mxu0 0.0
    %238 = vmatpush.msra.mxu0 0.0
    %239 = vmatpush.msra.mxu0 0.0
    %240 = vmatpush.msra.mxu0 0.0
    %241 = vmatpush.msra.mxu0 %v42
    %242 = vmatpush.msra.mxu0 %v41
    %243 = vmatpush.msra.mxu0 %v40
    %244 = vmatpush.msra.mxu0 %v39
    %245 = vmatmul.f32.gmra.mxu0 %v227
    %v246 = vpop.f32.mrf.mxu0
    %v247 = vadd.f32 0.0, %v246
    %248 = vdwg.mxu0
    %250 = vrot.lane.b32.xlu0 %v65, 96
    %v251 = vpop.permute.xlu0 %250
    %v253 = vadd.f32 %v204, %v251
    %v254 = vadd.f32 %v224, %v251
    %v255 = vadd.f32 %v125, %v204
    %v256 = vxor.u32 %v255, 2147483648
    %v257 = vmul.f32 %v256, 1.442695
    %v258 = vpow.pop %v257
    %v259 = vadd.f32 %v258, 1.0
    %v260 = vrcp.pop %v259
    %v261 = vmul.f32 %v259, %v260
    %v262 = vsub.f32 1.0, %v261
    %v263 = vmul.f32 %v260, %v262
    %v264 = vadd.f32 %v260, %v263
    %vm265 = vweird.f32 %v259
    %vm266 = vweird.f32 %v260
    %vm267 = vmor %vm265, %vm266
    %v268 = vsel %vm267, %v260, %v264
    %v269 = vand.u32 2147483647, %v259
    %vm270 = vcmp.eq.f32.partialorder %v269, 8.507059e+37
    %v271 = vand.u32 %v259, 2147483648
    %v272 = vor.u32 1.1754944e-38, %v271
    %v273 = vsel %vm270, %v272, %v268
    %v274 = vmul.f32 1.0, %v273
    %276 = vrot.lane.b32.xlu0 %v64, 64
    %v277 = vpop.permute.xlu0 %276
    %v279 = vadd.f32 %v204, %v277
    %281 = vrot.lane.b32.xlu0 %v279, 64
    %v282 = vpop.permute.xlu0 %281
    %v284 = vmul.f32 %v274, %v282
    %286 = vrot.lane.b32.xlu0 %v284, 64
    %v287 = vpop.permute.xlu0 %286
    %v289 = vadd.f32 %v125, %v287
    %v290 = vtanh.pop %v289
    %v291 = vsub.f32 1.0, %v274
    %293 = vrot.lane.b32.xlu0 %v290, 96
    %v294 = vpop.permute.xlu0 %293
    %v296 = vmul.f32 %v291, %v294
    %v297 = vmul.f32 %v274, %v180
    %v298 = vadd.f32 %v296, %v297
    %300 = vrot.lane.b32.xlu0 %v247, 96
    %v301 = vpop.permute.xlu0 %300
    %v303 = vadd.f32 %v253, %v301
    %v304 = vadd.f32 %v254, %v301
    %v305 = vxor.u32 %v303, 2147483648
    %v306 = vxor.u32 %v304, 2147483648
    %v307 = vmul.f32 %v305, 1.442695
    %v308 = vpow.pop %v307
    %v309 = vmul.f32 %v306, 1.442695
    %v310 = vpow.pop %v309
    %v311 = vadd.f32 %v308, 1.0
    %v312 = vadd.f32 %v310, 1.0
    %v313 = vrcp.pop %v311
    %v314 = vmul.f32 %v311, %v313
    %v315 = vsub.f32 1.0, %v314
    %v316 = vmul.f32 %v313, %v315
    %v317 = vadd.f32 %v313, %v316
    %vm318 = vweird.f32 %v311
    %vm319 = vweird.f32 %v313
    %vm320 = vmor %vm318, %vm319
    %v321 = vsel %vm320, %v313, %v317
    %v322 = vand.u32 2147483647, %v311
    %vm323 = vcmp.eq.f32.partialorder %v322, 8.507059e+37
    %v324 = vand.u32 %v311, 2147483648
    %v325 = vor.u32 1.1754944e-38, %v324
    %v326 = vsel %vm323, %v325, %v321
    %v327 = vmul.f32 1.0, %v326
    %v328 = vrcp.pop %v312
    %v329 = vmul.f32 %v312, %v328
    %v330 = vsub.f32 1.0, %v329
    %v331 = vmul.f32 %v328, %v330
    %v332 = vadd.f32 %v328, %v331
    %vm333 = vweird.f32 %v312
    %vm334 = vweird.f32 %v328
    %vm335 = vmor %vm333, %vm334
    %v336 = vsel %vm335, %v328, %v332
    %v337 = vand.u32 2147483647, %v312
    %vm338 = vcmp.eq.f32.partialorder %v337, 8.507059e+37
    %v339 = vand.u32 %v312, 2147483648
    %v340 = vor.u32 1.1754944e-38, %v339
    %v341 = vsel %vm338, %v340, %v336
    %v342 = vmul.f32 1.0, %v341
    %344 = vrot.lane.b32.xlu0 %v66, 64
    %v345 = vpop.permute.xlu0 %344
    %v347 = vadd.f32 %v247, %v345
    %349 = vrot.lane.b32.xlu0 %v347, 32
    %v350 = vpop.permute.xlu0 %349
    %v352 = vmul.f32 %v327, %v350
    %354 = vrot.lane.b32.xlu0 %v352, 64
    %v355 = vpop.permute.xlu0 %354
    %v357 = vadd.f32 %v254, %v355
    %v358 = vtanh.pop %v357
    %v359 = vsub.f32 1.0, %v342
    %361 = vrot.lane.b32.xlu0 %v358, 96
    %v362 = vpop.permute.xlu0 %361
    %v364 = vmul.f32 %v359, %v362
    %v365 = vmul.f32 %v342, 0.0
    %v366 = vadd.f32 %v364, %v365
    %v367 = vadd.f32 %v366, 0.0
    %369 = vrot.lane.b32.xlu0 %v298, 96
    %v370 = vpop.permute.xlu0 %369
    %v371 = vsel %vm79, %v370, 0
    %373 = vmatpush.msra.mxu0 0.0
    %374 = vmatpush.msra.mxu0 0.0
    %375 = vmatpush.msra.mxu0 0.0
    %376 = vmatpush.msra.mxu0 0.0
    %377 = vmatpush.msra.mxu0 0.0
    %378 = vmatpush.msra.mxu0 0.0
    %379 = vmatpush.msra.mxu0 0.0
    %380 = vmatpush.msra.mxu0 0.0
    %381 = vmatpush.msra.mxu0 0.0
    %382 = vmatpush.msra.mxu0 0.0
    %383 = vmatpush.msra.mxu0 0.0
    %384 = vmatpush.msra.mxu0 0.0
    %385 = vmatpush.msra.mxu0 %v37
    %386 = vmatpush.msra.mxu0 %v35
    %387 = vmatpush.msra.mxu0 %v33
    %388 = vmatpush.msra.mxu0 %v31
    %389 = vmatmul.f32.gmra.mxu0 %v371
    %v390 = vpop.f32.mrf.mxu0
    %v391 = vadd.f32 0.0, %v390
    %392 = vdwg.mxu0
    %393 = vmatpush.msra.mxu0 0.0
    %394 = vmatpush.msra.mxu0 0.0
    %395 = vmatpush.msra.mxu0 0.0
    %396 = vmatpush.msra.mxu0 0.0
    %397 = vmatpush.msra.mxu0 0.0
    %398 = vmatpush.msra.mxu0 0.0
    %399 = vmatpush.msra.mxu0 0.0
    %400 = vmatpush.msra.mxu0 0.0
    %401 = vmatpush.msra.mxu0 0.0
    %402 = vmatpush.msra.mxu0 0.0
    %403 = vmatpush.msra.mxu0 0.0
    %404 = vmatpush.msra.mxu0 0.0
    %405 = vmatpush.msra.mxu0 %v38
    %406 = vmatpush.msra.mxu0 %v36
    %407 = vmatpush.msra.mxu0 %v34
    %408 = vmatpush.msra.mxu0 %v32
    %409 = vmatmul.f32.gmra.mxu0 %v371
    %v410 = vpop.f32.mrf.mxu0
    %v411 = vadd.f32 0.0, %v410
    %412 = vdwg.mxu0
    %v414 = vsel %vm79, %v366, 0
    %416 = vmatpush.msra.mxu0 0.0
    %417 = vmatpush.msra.mxu0 0.0
    %418 = vmatpush.msra.mxu0 0.0
    %419 = vmatpush.msra.mxu0 0.0
    %420 = vmatpush.msra.mxu0 0.0
    %421 = vmatpush.msra.mxu0 0.0
    %422 = vmatpush.msra.mxu0 0.0
    %423 = vmatpush.msra.mxu0 0.0
    %424 = vmatpush.msra.mxu0 0.0
    %425 = vmatpush.msra.mxu0 0.0
    %426 = vmatpush.msra.mxu0 0.0
    %427 = vmatpush.msra.mxu0 0.0
    %428 = vmatpush.msra.mxu0 %v42
    %429 = vmatpush.msra.mxu0 %v41
    %430 = vmatpush.msra.mxu0 %v40
    %431 = vmatpush.msra.mxu0 %v39
    %432 = vmatmul.f32.gmra.mxu0 %v414
    %v433 = vpop.f32.mrf.mxu0
    %v434 = vadd.f32 0.0, %v433
    %435 = vdwg.mxu0
    %v436 = vadd.f32 %v391, %v251
    %v437 = vadd.f32 %v411, %v251
    %v438 = vadd.f32 %v128, %v391
    %v439 = vxor.u32 %v438, 2147483648
    %v440 = vmul.f32 %v439, 1.442695
    %v441 = vpow.pop %v440
    %v442 = vadd.f32 %v441, 1.0
    %v443 = vrcp.pop %v442
    %v444 = vmul.f32 %v442, %v443
    %v445 = vsub.f32 1.0, %v444
    %v446 = vmul.f32 %v443, %v445
    %v447 = vadd.f32 %v443, %v446
    %vm448 = vweird.f32 %v442
    %vm449 = vweird.f32 %v443
    %vm450 = vmor %vm448, %vm449
    %v451 = vsel %vm450, %v443, %v447
    %v452 = vand.u32 2147483647, %v442
    %vm453 = vcmp.eq.f32.partialorder %v452, 8.507059e+37
    %v454 = vand.u32 %v442, 2147483648
    %v455 = vor.u32 1.1754944e-38, %v454
    %v456 = vsel %vm453, %v455, %v451
    %v457 = vmul.f32 1.0, %v456
    %v458 = vadd.f32 %v391, %v277
    %460 = vrot.lane.b32.xlu0 %v458, 64
    %v461 = vpop.permute.xlu0 %460
    %v463 = vmul.f32 %v457, %v461
    %465 = vrot.lane.b32.xlu0 %v463, 64
    %v466 = vpop.permute.xlu0 %465
    %v468 = vadd.f32 %v128, %v466
    %v469 = vtanh.pop %v468
    %v470 = vsub.f32 1.0, %v457
    %472 = vrot.lane.b32.xlu0 %v469, 96
    %v473 = vpop.permute.xlu0 %472
    %v475 = vmul.f32 %v470, %v473
    %v476 = vmul.f32 %v457, %v298
    %v477 = vadd.f32 %v475, %v476
    %479 = vrot.lane.b32.xlu0 %v434, 96
    %v480 = vpop.permute.xlu0 %479
    %v482 = vadd.f32 %v436, %v480
    %v483 = vadd.f32 %v437, %v480
    %v484 = vxor.u32 %v482, 2147483648
    %v485 = vxor.u32 %v483, 2147483648
    %v486 = vmul.f32 %v484, 1.442695
    %v487 = vpow.pop %v486
    %v488 = vmul.f32 %v485, 1.442695
    %v489 = vpow.pop %v488
    %v490 = vadd.f32 %v487, 1.0
    %v491 = vadd.f32 %v489, 1.0
    %v492 = vrcp.pop %v490
    %v493 = vmul.f32 %v490, %v492
    %v494 = vsub.f32 1.0, %v493
    %v495 = vmul.f32 %v492, %v494
    %v496 = vadd.f32 %v492, %v495
    %vm497 = vweird.f32 %v490
    %vm498 = vweird.f32 %v492
    %vm499 = vmor %vm497, %vm498
    %v500 = vsel %vm499, %v492, %v496
    %v501 = vand.u32 2147483647, %v490
    %vm502 = vcmp.eq.f32.partialorder %v501, 8.507059e+37
    %v503 = vand.u32 %v490, 2147483648
    %v504 = vor.u32 1.1754944e-38, %v503
    %v505 = vsel %vm502, %v504, %v500
    %v506 = vmul.f32 1.0, %v505
    %v507 = vrcp.pop %v491
    %v508 = vmul.f32 %v491, %v507
    %v509 = vsub.f32 1.0, %v508
    %v510 = vmul.f32 %v507, %v509
    %v511 = vadd.f32 %v507, %v510
    %vm512 = vweird.f32 %v491
    %vm513 = vweird.f32 %v507
    %vm514 = vmor %vm512, %vm513
    %v515 = vsel %vm514, %v507, %v511
    %v516 = vand.u32 2147483647, %v491
    %vm517 = vcmp.eq.f32.partialorder %v516, 8.507059e+37
    %v518 = vand.u32 %v491, 2147483648
    %v519 = vor.u32 1.1754944e-38, %v518
    %v520 = vsel %vm517, %v519, %v515
    %v521 = vmul.f32 1.0, %v520
    %v522 = vadd.f32 %v434, %v345
    %524 = vrot.lane.b32.xlu0 %v522, 32
    %v525 = vpop.permute.xlu0 %524
    %v527 = vmul.f32 %v506, %v525
    %529 = vrot.lane.b32.xlu0 %v527, 64
    %v530 = vpop.permute.xlu0 %529
    %v532 = vadd.f32 %v437, %v530
    %v533 = vtanh.pop %v532
    %v534 = vsub.f32 1.0, %v521
    %536 = vrot.lane.b32.xlu0 %v533, 96
    %v537 = vpop.permute.xlu0 %536
    %v539 = vmul.f32 %v534, %v537
    %v540 = vmul.f32 %v521, %v366
    %v541 = vadd.f32 %v539, %v540
    %v542 = vadd.f32 %v367, %v541
    %544 = vrot.lane.b32.xlu0 %v477, 96
    %v545 = vpop.permute.xlu0 %544
    %v546 = vsel %vm79, %v545, 0
    %548 = vmatpush.msra.mxu0 0.0
    %549 = vmatpush.msra.mxu0 0.0
    %550 = vmatpush.msra.mxu0 0.0
    %551 = vmatpush.msra.mxu0 0.0
    %552 = vmatpush.msra.mxu0 0.0
    %553 = vmatpush.msra.mxu0 0.0
    %554 = vmatpush.msra.mxu0 0.0
    %555 = vmatpush.msra.mxu0 0.0
    %556 = vmatpush.msra.mxu0 0.0
    %557 = vmatpush.msra.mxu0 0.0
    %558 = vmatpush.msra.mxu0 0.0
    %559 = vmatpush.msra.mxu0 0.0
    %560 = vmatpush.msra.mxu0 %v37
    %561 = vmatpush.msra.mxu0 %v35
    %562 = vmatpush.msra.mxu0 %v33
    %563 = vmatpush.msra.mxu0 %v31
    %564 = vmatmul.f32.gmra.mxu0 %v546
    %v565 = vpop.f32.mrf.mxu0
    %v566 = vadd.f32 0.0, %v565
    %567 = vdwg.mxu0
    %568 = vmatpush.msra.mxu0 0.0
    %569 = vmatpush.msra.mxu0 0.0
    %570 = vmatpush.msra.mxu0 0.0
    %571 = vmatpush.msra.mxu0 0.0
    %572 = vmatpush.msra.mxu0 0.0
    %573 = vmatpush.msra.mxu0 0.0
    %574 = vmatpush.msra.mxu0 0.0
    %575 = vmatpush.msra.mxu0 0.0
    %576 = vmatpush.msra.mxu0 0.0
    %577 = vmatpush.msra.mxu0 0.0
    %578 = vmatpush.msra.mxu0 0.0
    %579 = vmatpush.msra.mxu0 0.0
    %580 = vmatpush.msra.mxu0 %v38
    %581 = vmatpush.msra.mxu0 %v36
    %582 = vmatpush.msra.mxu0 %v34
    %583 = vmatpush.msra.mxu0 %v32
    %584 = vmatmul.f32.gmra.mxu0 %v546
    %v585 = vpop.f32.mrf.mxu0
    %v586 = vadd.f32 0.0, %v585
    %587 = vdwg.mxu0
    %v589 = vsel %vm79, %v541, 0
    %591 = vmatpush.msra.mxu0 0.0
    %592 = vmatpush.msra.mxu0 0.0
    %593 = vmatpush.msra.mxu0 0.0
    %594 = vmatpush.msra.mxu0 0.0
    %595 = vmatpush.msra.mxu0 0.0
    %596 = vmatpush.msra.mxu0 0.0
    %597 = vmatpush.msra.mxu0 0.0
    %598 = vmatpush.msra.mxu0 0.0
    %599 = vmatpush.msra.mxu0 0.0
    %600 = vmatpush.msra.mxu0 0.0
    %601 = vmatpush.msra.mxu0 0.0
    %602 = vmatpush.msra.mxu0 0.0
    %603 = vmatpush.msra.mxu0 %v42
    %604 = vmatpush.msra.mxu0 %v41
    %605 = vmatpush.msra.mxu0 %v40
    %606 = vmatpush.msra.mxu0 %v39
    %607 = vmatmul.f32.gmra.mxu0 %v589
    %v608 = vpop.f32.mrf.mxu0
    %v609 = vadd.f32 0.0, %v608
    %610 = vdwg.mxu0
    %v611 = vadd.f32 %v566, %v251
    %v612 = vadd.f32 %v586, %v251
    %v613 = vadd.f32 %v131, %v566
    %v614 = vxor.u32 %v613, 2147483648
    %v615 = vmul.f32 %v614, 1.442695
    %v616 = vpow.pop %v615
    %v617 = vadd.f32 %v616, 1.0
    %v618 = vrcp.pop %v617
    %v619 = vmul.f32 %v617, %v618
    %v620 = vsub.f32 1.0, %v619
    %v621 = vmul.f32 %v618, %v620
    %v622 = vadd.f32 %v618, %v621
    %vm623 = vweird.f32 %v617
    %vm624 = vweird.f32 %v618
    %vm625 = vmor %vm623, %vm624
    %v626 = vsel %vm625, %v618, %v622
    %v627 = vand.u32 2147483647, %v617
    %vm628 = vcmp.eq.f32.partialorder %v627, 8.507059e+37
    %v629 = vand.u32 %v617, 2147483648
    %v630 = vor.u32 1.1754944e-38, %v629
    %v631 = vsel %vm628, %v630, %v626
    %v632 = vmul.f32 1.0, %v631
    %v633 = vadd.f32 %v566, %v277
    %635 = vrot.lane.b32.xlu0 %v633, 64
    %v636 = vpop.permute.xlu0 %635
    %v638 = vmul.f32 %v632, %v636
    %640 = vrot.lane.b32.xlu0 %v638, 64
    %v641 = vpop.permute.xlu0 %640
    %v643 = vadd.f32 %v131, %v641
    %v644 = vtanh.pop %v643
    %v645 = vsub.f32 1.0, %v632
    %647 = vrot.lane.b32.xlu0 %v644, 96
    %v648 = vpop.permute.xlu0 %647
    %v650 = vmul.f32 %v645, %v648
    %v651 = vmul.f32 %v632, %v477
    %v652 = vadd.f32 %v650, %v651
    %654 = vrot.lane.b32.xlu0 %v609, 96
    %v655 = vpop.permute.xlu0 %654
    %v657 = vadd.f32 %v611, %v655
    %v658 = vadd.f32 %v612, %v655
    %v659 = vxor.u32 %v657, 2147483648
    %v660 = vxor.u32 %v658, 2147483648
    %v661 = vmul.f32 %v659, 1.442695
    %v662 = vpow.pop %v661
    %v663 = vmul.f32 %v660, 1.442695
    %v664 = vpow.pop %v663
    %v665 = vadd.f32 %v662, 1.0
    %v666 = vadd.f32 %v664, 1.0
    %v667 = vrcp.pop %v665
    %v668 = vmul.f32 %v665, %v667
    %v669 = vsub.f32 1.0, %v668
    %v670 = vmul.f32 %v667, %v669
    %v671 = vadd.f32 %v667, %v670
    %vm672 = vweird.f32 %v665
    %vm673 = vweird.f32 %v667
    %vm674 = vmor %vm672, %vm673
    %v675 = vsel %vm674, %v667, %v671
    %v676 = vand.u32 2147483647, %v665
    %vm677 = vcmp.eq.f32.partialorder %v676, 8.507059e+37
    %v678 = vand.u32 %v665, 2147483648
    %v679 = vor.u32 1.1754944e-38, %v678
    %v680 = vsel %vm677, %v679, %v675
    %v681 = vmul.f32 1.0, %v680
    %v682 = vrcp.pop %v666
    %v683 = vmul.f32 %v666, %v682
    %v684 = vsub.f32 1.0, %v683
    %v685 = vmul.f32 %v682, %v684
    %v686 = vadd.f32 %v682, %v685
    %vm687 = vweird.f32 %v666
    %vm688 = vweird.f32 %v682
    %vm689 = vmor %vm687, %vm688
    %v690 = vsel %vm689, %v682, %v686
    %v691 = vand.u32 2147483647, %v666
    %vm692 = vcmp.eq.f32.partialorder %v691, 8.507059e+37
    %v693 = vand.u32 %v666, 2147483648
    %v694 = vor.u32 1.1754944e-38, %v693
    %v695 = vsel %vm692, %v694, %v690
    %v696 = vmul.f32 1.0, %v695
    %v697 = vadd.f32 %v609, %v345
    %699 = vrot.lane.b32.xlu0 %v697, 32
    %v700 = vpop.permute.xlu0 %699
    %v702 = vmul.f32 %v681, %v700
    %704 = vrot.lane.b32.xlu0 %v702, 64
    %v705 = vpop.permute.xlu0 %704
    %v707 = vadd.f32 %v612, %v705
    %v708 = vtanh.pop %v707
    %v709 = vsub.f32 1.0, %v696
    %711 = vrot.lane.b32.xlu0 %v708, 96
    %v712 = vpop.permute.xlu0 %711
    %v714 = vmul.f32 %v709, %v712
    %v715 = vmul.f32 %v696, %v541
    %v716 = vadd.f32 %v714, %v715
    %v717 = vadd.f32 %v542, %v716
    %719 = vrot.lane.b32.xlu0 %v652, 96
    %v720 = vpop.permute.xlu0 %719
    %v721 = vsel %vm79, %v720, 0
    %723 = vmatpush.msra.mxu0 0.0
    %724 = vmatpush.msra.mxu0 0.0
    %725 = vmatpush.msra.mxu0 0.0
    %726 = vmatpush.msra.mxu0 0.0
    %727 = vmatpush.msra.mxu0 0.0
    %728 = vmatpush.msra.mxu0 0.0
    %729 = vmatpush.msra.mxu0 0.0
    %730 = vmatpush.msra.mxu0 0.0
    %731 = vmatpush.msra.mxu0 0.0
    %732 = vmatpush.msra.mxu0 0.0
    %733 = vmatpush.msra.mxu0 0.0
    %734 = vmatpush.msra.mxu0 0.0
    %735 = vmatpush.msra.mxu0 %v37
    %736 = vmatpush.msra.mxu0 %v35
    %737 = vmatpush.msra.mxu0 %v33
    %738 = vmatpush.msra.mxu0 %v31
    %739 = vmatmul.f32.gmra.mxu0 %v721
    %v740 = vpop.f32.mrf.mxu0
    %v741 = vadd.f32 0.0, %v740
    %742 = vdwg.mxu0
    %743 = vmatpush.msra.mxu0 0.0
    %744 = vmatpush.msra.mxu0 0.0
    %745 = vmatpush.msra.mxu0 0.0
    %746 = vmatpush.msra.mxu0 0.0
    %747 = vmatpush.msra.mxu0 0.0
    %748 = vmatpush.msra.mxu0 0.0
    %749 = vmatpush.msra.mxu0 0.0
    %750 = vmatpush.msra.mxu0 0.0
    %751 = vmatpush.msra.mxu0 0.0
    %752 = vmatpush.msra.mxu0 0.0
    %753 = vmatpush.msra.mxu0 0.0
    %754 = vmatpush.msra.mxu0 0.0
    %755 = vmatpush.msra.mxu0 %v38
    %756 = vmatpush.msra.mxu0 %v36
    %757 = vmatpush.msra.mxu0 %v34
    %758 = vmatpush.msra.mxu0 %v32
    %759 = vmatmul.f32.gmra.mxu0 %v721
    %v760 = vpop.f32.mrf.mxu0
    %v761 = vadd.f32 0.0, %v760
    %762 = vdwg.mxu0
    %v764 = vsel %vm79, %v716, 0
    %766 = vmatpush.msra.mxu0 0.0
    %767 = vmatpush.msra.mxu0 0.0
    %768 = vmatpush.msra.mxu0 0.0
    %769 = vmatpush.msra.mxu0 0.0
    %770 = vmatpush.msra.mxu0 0.0
    %771 = vmatpush.msra.mxu0 0.0
    %772 = vmatpush.msra.mxu0 0.0
    %773 = vmatpush.msra.mxu0 0.0
    %774 = vmatpush.msra.mxu0 0.0
    %775 = vmatpush.msra.mxu0 0.0
    %776 = vmatpush.msra.mxu0 0.0
    %777 = vmatpush.msra.mxu0 0.0
    %778 = vmatpush.msra.mxu0 %v42
    %779 = vmatpush.msra.mxu0 %v41
    %780 = vmatpush.msra.mxu0 %v40
    %781 = vmatpush.msra.mxu0 %v39
    %782 = vmatmul.f32.gmra.mxu0 %v764
    %v783 = vpop.f32.mrf.mxu0
    %v784 = vadd.f32 0.0, %v783
    %785 = vdwg.mxu0
    %v786 = vadd.f32 %v741, %v251
    %v787 = vadd.f32 %v761, %v251
    %v788 = vadd.f32 %v134, %v741
    %v789 = vxor.u32 %v788, 2147483648
    %v790 = vmul.f32 %v789, 1.442695
    %v791 = vpow.pop %v790
    %v792 = vadd.f32 %v791, 1.0
    %v793 = vrcp.pop %v792
    %v794 = vmul.f32 %v792, %v793
    %v795 = vsub.f32 1.0, %v794
    %v796 = vmul.f32 %v793, %v795
    %v797 = vadd.f32 %v793, %v796
    %vm798 = vweird.f32 %v792
    %vm799 = vweird.f32 %v793
    %vm800 = vmor %vm798, %vm799
    %v801 = vsel %vm800, %v793, %v797
    %v802 = vand.u32 2147483647, %v792
    %vm803 = vcmp.eq.f32.partialorder %v802, 8.507059e+37
    %v804 = vand.u32 %v792, 2147483648
    %v805 = vor.u32 1.1754944e-38, %v804
    %v806 = vsel %vm803, %v805, %v801
    %v807 = vmul.f32 1.0, %v806
    %v808 = vadd.f32 %v741, %v277
    %810 = vrot.lane.b32.xlu0 %v808, 64
    %v811 = vpop.permute.xlu0 %810
    %v813 = vmul.f32 %v807, %v811
    %815 = vrot.lane.b32.xlu0 %v813, 64
    %v816 = vpop.permute.xlu0 %815
    %v818 = vadd.f32 %v134, %v816
    %v819 = vtanh.pop %v818
    %v820 = vsub.f32 1.0, %v807
    %822 = vrot.lane.b32.xlu0 %v819, 96
    %v823 = vpop.permute.xlu0 %822
    %v825 = vmul.f32 %v820, %v823
    %v826 = vmul.f32 %v807, %v652
    %v827 = vadd.f32 %v825, %v826
    %829 = vrot.lane.b32.xlu0 %v784, 96
    %v830 = vpop.permute.xlu0 %829
    %v832 = vadd.f32 %v786, %v830
    %v833 = vadd.f32 %v787, %v830
    %v834 = vxor.u32 %v832, 2147483648
    %v835 = vxor.u32 %v833, 2147483648
    %v836 = vmul.f32 %v834, 1.442695
    %v837 = vpow.pop %v836
    %v838 = vmul.f32 %v835, 1.442695
    %v839 = vpow.pop %v838
    %v840 = vadd.f32 %v837, 1.0
    %v841 = vadd.f32 %v839, 1.0
    %v842 = vrcp.pop %v840
    %v843 = vmul.f32 %v840, %v842
    %v844 = vsub.f32 1.0, %v843
    %v845 = vmul.f32 %v842, %v844
    %v846 = vadd.f32 %v842, %v845
    %vm847 = vweird.f32 %v840
    %vm848 = vweird.f32 %v842
    %vm849 = vmor %vm847, %vm848
    %v850 = vsel %vm849, %v842, %v846
    %v851 = vand.u32 2147483647, %v840
    %vm852 = vcmp.eq.f32.partialorder %v851, 8.507059e+37
    %v853 = vand.u32 %v840, 2147483648
    %v854 = vor.u32 1.1754944e-38, %v853
    %v855 = vsel %vm852, %v854, %v850
    %v856 = vmul.f32 1.0, %v855
    %v857 = vrcp.pop %v841
    %v858 = vmul.f32 %v841, %v857
    %v859 = vsub.f32 1.0, %v858
    %v860 = vmul.f32 %v857, %v859
    %v861 = vadd.f32 %v857, %v860
    %vm862 = vweird.f32 %v841
    %vm863 = vweird.f32 %v857
    %vm864 = vmor %vm862, %vm863
    %v865 = vsel %vm864, %v857, %v861
    %v866 = vand.u32 2147483647, %v841
    %vm867 = vcmp.eq.f32.partialorder %v866, 8.507059e+37
    %v868 = vand.u32 %v841, 2147483648
    %v869 = vor.u32 1.1754944e-38, %v868
    %v870 = vsel %vm867, %v869, %v865
    %v871 = vmul.f32 1.0, %v870
    %v872 = vadd.f32 %v784, %v345
    %874 = vrot.lane.b32.xlu0 %v872, 32
    %v875 = vpop.permute.xlu0 %874
    %v877 = vmul.f32 %v856, %v875
    %879 = vrot.lane.b32.xlu0 %v877, 64
    %v880 = vpop.permute.xlu0 %879
    %v882 = vadd.f32 %v787, %v880
    %v883 = vtanh.pop %v882
    %v884 = vsub.f32 1.0, %v871
    %886 = vrot.lane.b32.xlu0 %v883, 96
    %v887 = vpop.permute.xlu0 %886
    %v889 = vmul.f32 %v884, %v887
    %v890 = vmul.f32 %v871, %v716
    %v891 = vadd.f32 %v889, %v890
    %v892 = vadd.f32 %v717, %v891
    %894 = vrot.lane.b32.xlu0 %v827, 96
    %v895 = vpop.permute.xlu0 %894
    %v896 = vsel %vm79, %v895, 0
    %898 = vmatpush.msra.mxu0 0.0
    %899 = vmatpush.msra.mxu0 0.0
    %900 = vmatpush.msra.mxu0 0.0
    %901 = vmatpush.msra.mxu0 0.0
    %902 = vmatpush.msra.mxu0 0.0
    %903 = vmatpush.msra.mxu0 0.0
    %904 = vmatpush.msra.mxu0 0.0
    %905 = vmatpush.msra.mxu0 0.0
    %906 = vmatpush.msra.mxu0 0.0
    %907 = vmatpush.msra.mxu0 0.0
    %908 = vmatpush.msra.mxu0 0.0
    %909 = vmatpush.msra.mxu0 0.0
    %910 = vmatpush.msra.mxu0 %v37
    %911 = vmatpush.msra.mxu0 %v35
    %912 = vmatpush.msra.mxu0 %v33
    %913 = vmatpush.msra.mxu0 %v31
    %914 = vmatmul.f32.gmra.mxu0 %v896
    %v915 = vpop.f32.mrf.mxu0
    %v916 = vadd.f32 0.0, %v915
    %917 = vdwg.mxu0
    %918 = vmatpush.msra.mxu0 0.0
    %919 = vmatpush.msra.mxu0 0.0
    %920 = vmatpush.msra.mxu0 0.0
    %921 = vmatpush.msra.mxu0 0.0
    %922 = vmatpush.msra.mxu0 0.0
    %923 = vmatpush.msra.mxu0 0.0
    %924 = vmatpush.msra.mxu0 0.0
    %925 = vmatpush.msra.mxu0 0.0
    %926 = vmatpush.msra.mxu0 0.0
    %927 = vmatpush.msra.mxu0 0.0
    %928 = vmatpush.msra.mxu0 0.0
    %929 = vmatpush.msra.mxu0 0.0
    %930 = vmatpush.msra.mxu0 %v38
    %931 = vmatpush.msra.mxu0 %v36
    %932 = vmatpush.msra.mxu0 %v34
    %933 = vmatpush.msra.mxu0 %v32
    %934 = vmatmul.f32.gmra.mxu0 %v896
    %v935 = vpop.f32.mrf.mxu0
    %v936 = vadd.f32 0.0, %v935
    %937 = vdwg.mxu0
    %v939 = vsel %vm79, %v891, 0
    %941 = vmatpush.msra.mxu0 0.0
    %942 = vmatpush.msra.mxu0 0.0
    %943 = vmatpush.msra.mxu0 0.0
    %944 = vmatpush.msra.mxu0 0.0
    %945 = vmatpush.msra.mxu0 0.0
    %946 = vmatpush.msra.mxu0 0.0
    %947 = vmatpush.msra.mxu0 0.0
    %948 = vmatpush.msra.mxu0 0.0
    %949 = vmatpush.msra.mxu0 0.0
    %950 = vmatpush.msra.mxu0 0.0
    %951 = vmatpush.msra.mxu0 0.0
    %952 = vmatpush.msra.mxu0 0.0
    %953 = vmatpush.msra.mxu0 %v42
    %954 = vmatpush.msra.mxu0 %v41
    %955 = vmatpush.msra.mxu0 %v40
    %956 = vmatpush.msra.mxu0 %v39
    %957 = vmatmul.f32.gmra.mxu0 %v939
    %v958 = vpop.f32.mrf.mxu0
    %v959 = vadd.f32 0.0, %v958
    %960 = vdwg.mxu0
    %v961 = vadd.f32 %v916, %v251
    %v962 = vadd.f32 %v936, %v251
    %v963 = vadd.f32 %v137, %v916
    %v964 = vxor.u32 %v963, 2147483648
    %v965 = vmul.f32 %v964, 1.442695
    %v966 = vpow.pop %v965
    %v967 = vadd.f32 %v966, 1.0
    %v968 = vrcp.pop %v967
    %v969 = vmul.f32 %v967, %v968
    %v970 = vsub.f32 1.0, %v969
    %v971 = vmul.f32 %v968, %v970
    %v972 = vadd.f32 %v968, %v971
    %vm973 = vweird.f32 %v967
    %vm974 = vweird.f32 %v968
    %vm975 = vmor %vm973, %vm974
    %v976 = vsel %vm975, %v968, %v972
    %v977 = vand.u32 2147483647, %v967
    %vm978 = vcmp.eq.f32.partialorder %v977, 8.507059e+37
    %v979 = vand.u32 %v967, 2147483648
    %v980 = vor.u32 1.1754944e-38, %v979
    %v981 = vsel %vm978, %v980, %v976
    %v982 = vmul.f32 1.0, %v981
    %v983 = vadd.f32 %v916, %v277
    %985 = vrot.lane.b32.xlu0 %v983, 64
    %v986 = vpop.permute.xlu0 %985
    %v988 = vmul.f32 %v982, %v986
    %990 = vrot.lane.b32.xlu0 %v988, 64
    %v991 = vpop.permute.xlu0 %990
    %v993 = vadd.f32 %v137, %v991
    %v994 = vtanh.pop %v993
    %v995 = vsub.f32 1.0, %v982
    %997 = vrot.lane.b32.xlu0 %v994, 96
    %v998 = vpop.permute.xlu0 %997
    %v1000 = vmul.f32 %v995, %v998
    %v1001 = vmul.f32 %v982, %v827
    %v1002 = vadd.f32 %v1000, %v1001
    %1004 = vrot.lane.b32.xlu0 %v959, 96
    %v1005 = vpop.permute.xlu0 %1004
    %v1007 = vadd.f32 %v961, %v1005
    %v1008 = vadd.f32 %v962, %v1005
    %v1009 = vxor.u32 %v1007, 2147483648
    %v1010 = vxor.u32 %v1008, 2147483648
    %v1011 = vmul.f32 %v1009, 1.442695
    %v1012 = vpow.pop %v1011
    %v1013 = vmul.f32 %v1010, 1.442695
    %v1014 = vpow.pop %v1013
    %v1015 = vadd.f32 %v1012, 1.0
    %v1016 = vadd.f32 %v1014, 1.0
    %v1017 = vrcp.pop %v1015
    %v1018 = vmul.f32 %v1015, %v1017
    %v1019 = vsub.f32 1.0, %v1018
    %v1020 = vmul.f32 %v1017, %v1019
    %v1021 = vadd.f32 %v1017, %v1020
    %vm1022 = vweird.f32 %v1015
    %vm1023 = vweird.f32 %v1017
    %vm1024 = vmor %vm1022, %vm1023
    %v1025 = vsel %vm1024, %v1017, %v1021
    %v1026 = vand.u32 2147483647, %v1015
    %vm1027 = vcmp.eq.f32.partialorder %v1026, 8.507059e+37
    %v1028 = vand.u32 %v1015, 2147483648
    %v1029 = vor.u32 1.1754944e-38, %v1028
    %v1030 = vsel %vm1027, %v1029, %v1025
    %v1031 = vmul.f32 1.0, %v1030
    %v1032 = vrcp.pop %v1016
    %v1033 = vmul.f32 %v1016, %v1032
    %v1034 = vsub.f32 1.0, %v1033
    %v1035 = vmul.f32 %v1032, %v1034
    %v1036 = vadd.f32 %v1032, %v1035
    %vm1037 = vweird.f32 %v1016
    %vm1038 = vweird.f32 %v1032
    %vm1039 = vmor %vm1037, %vm1038
    %v1040 = vsel %vm1039, %v1032, %v1036
    %v1041 = vand.u32 2147483647, %v1016
    %vm1042 = vcmp.eq.f32.partialorder %v1041, 8.507059e+37
    %v1043 = vand.u32 %v1016, 2147483648
    %v1044 = vor.u32 1.1754944e-38, %v1043
    %v1045 = vsel %vm1042, %v1044, %v1040
    %v1046 = vmul.f32 1.0, %v1045
    %v1047 = vadd.f32 %v959, %v345
    %1049 = vrot.lane.b32.xlu0 %v1047, 32
    %v1050 = vpop.permute.xlu0 %1049
    %v1052 = vmul.f32 %v1031, %v1050
    %1054 = vrot.lane.b32.xlu0 %v1052, 64
    %v1055 = vpop.permute.xlu0 %1054
    %v1057 = vadd.f32 %v962, %v1055
    %v1058 = vtanh.pop %v1057
    %v1059 = vsub.f32 1.0, %v1046
    %1061 = vrot.lane.b32.xlu0 %v1058, 96
    %v1062 = vpop.permute.xlu0 %1061
    %v1064 = vmul.f32 %v1059, %v1062
    %v1065 = vmul.f32 %v1046, %v891
    %v1066 = vadd.f32 %v1064, %v1065
    %v1067 = vadd.f32 %v892, %v1066
    %1069 = vrot.lane.b32.xlu0 %v1002, 96
    %v1070 = vpop.permute.xlu0 %1069
    %v1071 = vsel %vm79, %v1070, 0
    %1073 = vmatpush.msra.mxu0 0.0
    %1074 = vmatpush.msra.mxu0 0.0
    %1075 = vmatpush.msra.mxu0 0.0
    %1076 = vmatpush.msra.mxu0 0.0
    %1077 = vmatpush.msra.mxu0 0.0
    %1078 = vmatpush.msra.mxu0 0.0
    %1079 = vmatpush.msra.mxu0 0.0
    %1080 = vmatpush.msra.mxu0 0.0
    %1081 = vmatpush.msra.mxu0 0.0
    %1082 = vmatpush.msra.mxu0 0.0
    %1083 = vmatpush.msra.mxu0 0.0
    %1084 = vmatpush.msra.mxu0 0.0
    %1085 = vmatpush.msra.mxu0 %v37
    %1086 = vmatpush.msra.mxu0 %v35
    %1087 = vmatpush.msra.mxu0 %v33
    %1088 = vmatpush.msra.mxu0 %v31
    %1089 = vmatmul.f32.gmra.mxu0 %v1071
    %v1090 = vpop.f32.mrf.mxu0
    %v1091 = vadd.f32 0.0, %v1090
    %1092 = vdwg.mxu0
    %1093 = vmatpush.msra.mxu0 0.0
    %1094 = vmatpush.msra.mxu0 0.0
    %1095 = vmatpush.msra.mxu0 0.0
    %1096 = vmatpush.msra.mxu0 0.0
    %1097 = vmatpush.msra.mxu0 0.0
    %1098 = vmatpush.msra.mxu0 0.0
    %1099 = vmatpush.msra.mxu0 0.0
    %1100 = vmatpush.msra.mxu0 0.0
    %1101 = vmatpush.msra.mxu0 0.0
    %1102 = vmatpush.msra.mxu0 0.0
    %1103 = vmatpush.msra.mxu0 0.0
    %1104 = vmatpush.msra.mxu0 0.0
    %1105 = vmatpush.msra.mxu0 %v38
    %1106 = vmatpush.msra.mxu0 %v36
    %1107 = vmatpush.msra.mxu0 %v34
    %1108 = vmatpush.msra.mxu0 %v32
    %1109 = vmatmul.f32.gmra.mxu0 %v1071
    %v1110 = vpop.f32.mrf.mxu0
    %v1111 = vadd.f32 0.0, %v1110
    %1112 = vdwg.mxu0
    %v1114 = vsel %vm79, %v1066, 0
    %1116 = vmatpush.msra.mxu0 0.0
    %1117 = vmatpush.msra.mxu0 0.0
    %1118 = vmatpush.msra.mxu0 0.0
    %1119 = vmatpush.msra.mxu0 0.0
    %1120 = vmatpush.msra.mxu0 0.0
    %1121 = vmatpush.msra.mxu0 0.0
    %1122 = vmatpush.msra.mxu0 0.0
    %1123 = vmatpush.msra.mxu0 0.0
    %1124 = vmatpush.msra.mxu0 0.0
    %1125 = vmatpush.msra.mxu0 0.0
    %1126 = vmatpush.msra.mxu0 0.0
    %1127 = vmatpush.msra.mxu0 0.0
    %1128 = vmatpush.msra.mxu0 %v42
    %1129 = vmatpush.msra.mxu0 %v41
    %1130 = vmatpush.msra.mxu0 %v40
    %1131 = vmatpush.msra.mxu0 %v39
    %1132 = vmatmul.f32.gmra.mxu0 %v1114
    %v1133 = vpop.f32.mrf.mxu0
    %v1134 = vadd.f32 0.0, %v1133
    %1135 = vdwg.mxu0
    %v1136 = vadd.f32 %v1091, %v251
    %v1137 = vadd.f32 %v1111, %v251
    %v1138 = vadd.f32 %v140, %v1091
    %v1139 = vxor.u32 %v1138, 2147483648
    %v1140 = vmul.f32 %v1139, 1.442695
    %v1141 = vpow.pop %v1140
    %v1142 = vadd.f32 %v1141, 1.0
    %v1143 = vrcp.pop %v1142
    %v1144 = vmul.f32 %v1142, %v1143
    %v1145 = vsub.f32 1.0, %v1144
    %v1146 = vmul.f32 %v1143, %v1145
    %v1147 = vadd.f32 %v1143, %v1146
    %vm1148 = vweird.f32 %v1142
    %vm1149 = vweird.f32 %v1143
    %vm1150 = vmor %vm1148, %vm1149
    %v1151 = vsel %vm1150, %v1143, %v1147
    %v1152 = vand.u32 2147483647, %v1142
    %vm1153 = vcmp.eq.f32.partialorder %v1152, 8.507059e+37
    %v1154 = vand.u32 %v1142, 2147483648
    %v1155 = vor.u32 1.1754944e-38, %v1154
    %v1156 = vsel %vm1153, %v1155, %v1151
    %v1157 = vmul.f32 1.0, %v1156
    %v1158 = vadd.f32 %v1091, %v277
    %1160 = vrot.lane.b32.xlu0 %v1158, 64
    %v1161 = vpop.permute.xlu0 %1160
    %v1163 = vmul.f32 %v1157, %v1161
    %1165 = vrot.lane.b32.xlu0 %v1163, 64
    %v1166 = vpop.permute.xlu0 %1165
    %v1168 = vadd.f32 %v140, %v1166
    %v1169 = vtanh.pop %v1168
    %v1170 = vsub.f32 1.0, %v1157
    %1172 = vrot.lane.b32.xlu0 %v1169, 96
    %v1173 = vpop.permute.xlu0 %1172
    %v1175 = vmul.f32 %v1170, %v1173
    %v1176 = vmul.f32 %v1157, %v1002
    %v1177 = vadd.f32 %v1175, %v1176
    %1179 = vrot.lane.b32.xlu0 %v1134, 96
    %v1180 = vpop.permute.xlu0 %1179
    %v1182 = vadd.f32 %v1136, %v1180
    %v1183 = vadd.f32 %v1137, %v1180
    %v1184 = vxor.u32 %v1182, 2147483648
    %v1185 = vxor.u32 %v1183, 2147483648
    %v1186 = vmul.f32 %v1184, 1.442695
    %v1187 = vpow.pop %v1186
    %v1188 = vmul.f32 %v1185, 1.442695
    %v1189 = vpow.pop %v1188
    %v1190 = vadd.f32 %v1187, 1.0
    %v1191 = vadd.f32 %v1189, 1.0
    %v1192 = vrcp.pop %v1190
    %v1193 = vmul.f32 %v1190, %v1192
    %v1194 = vsub.f32 1.0, %v1193
    %v1195 = vmul.f32 %v1192, %v1194
    %v1196 = vadd.f32 %v1192, %v1195
    %vm1197 = vweird.f32 %v1190
    %vm1198 = vweird.f32 %v1192
    %vm1199 = vmor %vm1197, %vm1198
    %v1200 = vsel %vm1199, %v1192, %v1196
    %v1201 = vand.u32 2147483647, %v1190
    %vm1202 = vcmp.eq.f32.partialorder %v1201, 8.507059e+37
    %v1203 = vand.u32 %v1190, 2147483648
    %v1204 = vor.u32 1.1754944e-38, %v1203
    %v1205 = vsel %vm1202, %v1204, %v1200
    %v1206 = vmul.f32 1.0, %v1205
    %v1207 = vrcp.pop %v1191
    %v1208 = vmul.f32 %v1191, %v1207
    %v1209 = vsub.f32 1.0, %v1208
    %v1210 = vmul.f32 %v1207, %v1209
    %v1211 = vadd.f32 %v1207, %v1210
    %vm1212 = vweird.f32 %v1191
    %vm1213 = vweird.f32 %v1207
    %vm1214 = vmor %vm1212, %vm1213
    %v1215 = vsel %vm1214, %v1207, %v1211
    %v1216 = vand.u32 2147483647, %v1191
    %vm1217 = vcmp.eq.f32.partialorder %v1216, 8.507059e+37
    %v1218 = vand.u32 %v1191, 2147483648
    %v1219 = vor.u32 1.1754944e-38, %v1218
    %v1220 = vsel %vm1217, %v1219, %v1215
    %v1221 = vmul.f32 1.0, %v1220
    %v1222 = vadd.f32 %v1134, %v345
    %1224 = vrot.lane.b32.xlu0 %v1222, 32
    %v1225 = vpop.permute.xlu0 %1224
    %v1227 = vmul.f32 %v1206, %v1225
    %1229 = vrot.lane.b32.xlu0 %v1227, 64
    %v1230 = vpop.permute.xlu0 %1229
    %v1232 = vadd.f32 %v1137, %v1230
    %v1233 = vtanh.pop %v1232
    %v1234 = vsub.f32 1.0, %v1221
    %1236 = vrot.lane.b32.xlu0 %v1233, 96
    %v1237 = vpop.permute.xlu0 %1236
    %v1239 = vmul.f32 %v1234, %v1237
    %v1240 = vmul.f32 %v1221, %v1066
    %v1241 = vadd.f32 %v1239, %v1240
    %v1242 = vadd.f32 %v1067, %v1241
    %1244 = vrot.lane.b32.xlu0 %v1177, 96
    %v1245 = vpop.permute.xlu0 %1244
    %v1246 = vsel %vm79, %v1245, 0
    %1248 = vmatpush.msra.mxu0 0.0
    %1249 = vmatpush.msra.mxu0 0.0
    %1250 = vmatpush.msra.mxu0 0.0
    %1251 = vmatpush.msra.mxu0 0.0
    %1252 = vmatpush.msra.mxu0 0.0
    %1253 = vmatpush.msra.mxu0 0.0
    %1254 = vmatpush.msra.mxu0 0.0
    %1255 = vmatpush.msra.mxu0 0.0
    %1256 = vmatpush.msra.mxu0 0.0
    %1257 = vmatpush.msra.mxu0 0.0
    %1258 = vmatpush.msra.mxu0 0.0
    %1259 = vmatpush.msra.mxu0 0.0
    %1260 = vmatpush.msra.mxu0 %v37
    %1261 = vmatpush.msra.mxu0 %v35
    %1262 = vmatpush.msra.mxu0 %v33
    %1263 = vmatpush.msra.mxu0 %v31
    %1264 = vmatmul.f32.gmra.mxu0 %v1246
    %v1265 = vpop.f32.mrf.mxu0
    %v1266 = vadd.f32 0.0, %v1265
    %1267 = vdwg.mxu0
    %1268 = vmatpush.msra.mxu0 0.0
    %1269 = vmatpush.msra.mxu0 0.0
    %1270 = vmatpush.msra.mxu0 0.0
    %1271 = vmatpush.msra.mxu0 0.0
    %1272 = vmatpush.msra.mxu0 0.0
    %1273 = vmatpush.msra.mxu0 0.0
    %1274 = vmatpush.msra.mxu0 0.0
    %1275 = vmatpush.msra.mxu0 0.0
    %1276 = vmatpush.msra.mxu0 0.0
    %1277 = vmatpush.msra.mxu0 0.0
    %1278 = vmatpush.msra.mxu0 0.0
    %1279 = vmatpush.msra.mxu0 0.0
    %1280 = vmatpush.msra.mxu0 %v38
    %1281 = vmatpush.msra.mxu0 %v36
    %1282 = vmatpush.msra.mxu0 %v34
    %1283 = vmatpush.msra.mxu0 %v32
    %1284 = vmatmul.f32.gmra.mxu0 %v1246
    %v1285 = vpop.f32.mrf.mxu0
    %v1286 = vadd.f32 0.0, %v1285
    %1287 = vdwg.mxu0
    %v1289 = vsel %vm79, %v1241, 0
    %1291 = vmatpush.msra.mxu0 0.0
    %1292 = vmatpush.msra.mxu0 0.0
    %1293 = vmatpush.msra.mxu0 0.0
    %1294 = vmatpush.msra.mxu0 0.0
    %1295 = vmatpush.msra.mxu0 0.0
    %1296 = vmatpush.msra.mxu0 0.0
    %1297 = vmatpush.msra.mxu0 0.0
    %1298 = vmatpush.msra.mxu0 0.0
    %1299 = vmatpush.msra.mxu0 0.0
    %1300 = vmatpush.msra.mxu0 0.0
    %1301 = vmatpush.msra.mxu0 0.0
    %1302 = vmatpush.msra.mxu0 0.0
    %1303 = vmatpush.msra.mxu0 %v42
    %1304 = vmatpush.msra.mxu0 %v41
    %1305 = vmatpush.msra.mxu0 %v40
    %1306 = vmatpush.msra.mxu0 %v39
    %1307 = vmatmul.f32.gmra.mxu0 %v1289
    %v1308 = vpop.f32.mrf.mxu0
    %v1309 = vadd.f32 0.0, %v1308
    %1310 = vdwg.mxu0
    %v1311 = vadd.f32 %v1266, %v251
    %v1312 = vadd.f32 %v1286, %v251
    %v1313 = vadd.f32 %v143, %v1266
    %v1314 = vxor.u32 %v1313, 2147483648
    %v1315 = vmul.f32 %v1314, 1.442695
    %v1316 = vpow.pop %v1315
    %v1317 = vadd.f32 %v1316, 1.0
    %v1318 = vrcp.pop %v1317
    %v1319 = vmul.f32 %v1317, %v1318
    %v1320 = vsub.f32 1.0, %v1319
    %v1321 = vmul.f32 %v1318, %v1320
    %v1322 = vadd.f32 %v1318, %v1321
    %vm1323 = vweird.f32 %v1317
    %vm1324 = vweird.f32 %v1318
    %vm1325 = vmor %vm1323, %vm1324
    %v1326 = vsel %vm1325, %v1318, %v1322
    %v1327 = vand.u32 2147483647, %v1317
    %vm1328 = vcmp.eq.f32.partialorder %v1327, 8.507059e+37
    %v1329 = vand.u32 %v1317, 2147483648
    %v1330 = vor.u32 1.1754944e-38, %v1329
    %v1331 = vsel %vm1328, %v1330, %v1326
    %v1332 = vmul.f32 1.0, %v1331
    %v1333 = vadd.f32 %v1266, %v277
    %1335 = vrot.lane.b32.xlu0 %v1333, 64
    %v1336 = vpop.permute.xlu0 %1335
    %v1338 = vmul.f32 %v1332, %v1336
    %1340 = vrot.lane.b32.xlu0 %v1338, 64
    %v1341 = vpop.permute.xlu0 %1340
    %v1343 = vadd.f32 %v143, %v1341
    %v1344 = vtanh.pop %v1343
    %v1345 = vsub.f32 1.0, %v1332
    %1347 = vrot.lane.b32.xlu0 %v1344, 96
    %v1348 = vpop.permute.xlu0 %1347
    %v1350 = vmul.f32 %v1345, %v1348
    %v1351 = vmul.f32 %v1332, %v1177
    %v1352 = vadd.f32 %v1350, %v1351
    %1354 = vrot.lane.b32.xlu0 %v1309, 96
    %v1355 = vpop.permute.xlu0 %1354
    %v1357 = vadd.f32 %v1311, %v1355
    %v1358 = vadd.f32 %v1312, %v1355
    %v1359 = vxor.u32 %v1357, 2147483648
    %v1360 = vxor.u32 %v1358, 2147483648
    %v1361 = vmul.f32 %v1359, 1.442695
    %v1362 = vpow.pop %v1361
    %v1363 = vmul.f32 %v1360, 1.442695
    %v1364 = vpow.pop %v1363
    %v1365 = vadd.f32 %v1362, 1.0
    %v1366 = vadd.f32 %v1364, 1.0
    %v1367 = vrcp.pop %v1365
    %v1368 = vmul.f32 %v1365, %v1367
    %v1369 = vsub.f32 1.0, %v1368
    %v1370 = vmul.f32 %v1367, %v1369
    %v1371 = vadd.f32 %v1367, %v1370
    %vm1372 = vweird.f32 %v1365
    %vm1373 = vweird.f32 %v1367
    %vm1374 = vmor %vm1372, %vm1373
    %v1375 = vsel %vm1374, %v1367, %v1371
    %v1376 = vand.u32 2147483647, %v1365
    %vm1377 = vcmp.eq.f32.partialorder %v1376, 8.507059e+37
    %v1378 = vand.u32 %v1365, 2147483648
    %v1379 = vor.u32 1.1754944e-38, %v1378
    %v1380 = vsel %vm1377, %v1379, %v1375
    %v1381 = vmul.f32 1.0, %v1380
    %v1382 = vrcp.pop %v1366
    %v1383 = vmul.f32 %v1366, %v1382
    %v1384 = vsub.f32 1.0, %v1383
    %v1385 = vmul.f32 %v1382, %v1384
    %v1386 = vadd.f32 %v1382, %v1385
    %vm1387 = vweird.f32 %v1366
    %vm1388 = vweird.f32 %v1382
    %vm1389 = vmor %vm1387, %vm1388
    %v1390 = vsel %vm1389, %v1382, %v1386
    %v1391 = vand.u32 2147483647, %v1366
    %vm1392 = vcmp.eq.f32.partialorder %v1391, 8.507059e+37
    %v1393 = vand.u32 %v1366, 2147483648
    %v1394 = vor.u32 1.1754944e-38, %v1393
    %v1395 = vsel %vm1392, %v1394, %v1390
    %v1396 = vmul.f32 1.0, %v1395
    %v1397 = vadd.f32 %v1309, %v345
    %1399 = vrot.lane.b32.xlu0 %v1397, 32
    %v1400 = vpop.permute.xlu0 %1399
    %v1402 = vmul.f32 %v1381, %v1400
    %1404 = vrot.lane.b32.xlu0 %v1402, 64
    %v1405 = vpop.permute.xlu0 %1404
    %v1407 = vadd.f32 %v1312, %v1405
    %v1408 = vtanh.pop %v1407
    %v1409 = vsub.f32 1.0, %v1396
    %1411 = vrot.lane.b32.xlu0 %v1408, 96
    %v1412 = vpop.permute.xlu0 %1411
    %v1414 = vmul.f32 %v1409, %v1412
    %v1415 = vmul.f32 %v1396, %v1241
    %v1416 = vadd.f32 %v1414, %v1415
    %v1417 = vadd.f32 %v1242, %v1416
    %1419 = vrot.lane.b32.xlu0 %v1352, 96
    %v1420 = vpop.permute.xlu0 %1419
    %v1421 = vsel %vm79, %v1420, 0
    %1423 = vmatpush.msra.mxu0 0.0
    %1424 = vmatpush.msra.mxu0 0.0
    %1425 = vmatpush.msra.mxu0 0.0
    %1426 = vmatpush.msra.mxu0 0.0
    %1427 = vmatpush.msra.mxu0 0.0
    %1428 = vmatpush.msra.mxu0 0.0
    %1429 = vmatpush.msra.mxu0 0.0
    %1430 = vmatpush.msra.mxu0 0.0
    %1431 = vmatpush.msra.mxu0 0.0
    %1432 = vmatpush.msra.mxu0 0.0
    %1433 = vmatpush.msra.mxu0 0.0
    %1434 = vmatpush.msra.mxu0 0.0
    %1435 = vmatpush.msra.mxu0 %v37
    %1436 = vmatpush.msra.mxu0 %v35
    %1437 = vmatpush.msra.mxu0 %v33
    %1438 = vmatpush.msra.mxu0 %v31
    %1439 = vmatmul.f32.gmra.mxu0 %v1421
    %v1440 = vpop.f32.mrf.mxu0
    %v1441 = vadd.f32 0.0, %v1440
    %1442 = vdwg.mxu0
    %1443 = vmatpush.msra.mxu0 0.0
    %1444 = vmatpush.msra.mxu0 0.0
    %1445 = vmatpush.msra.mxu0 0.0
    %1446 = vmatpush.msra.mxu0 0.0
    %1447 = vmatpush.msra.mxu0 0.0
    %1448 = vmatpush.msra.mxu0 0.0
    %1449 = vmatpush.msra.mxu0 0.0
    %1450 = vmatpush.msra.mxu0 0.0
    %1451 = vmatpush.msra.mxu0 0.0
    %1452 = vmatpush.msra.mxu0 0.0
    %1453 = vmatpush.msra.mxu0 0.0
    %1454 = vmatpush.msra.mxu0 0.0
    %1455 = vmatpush.msra.mxu0 %v38
    %1456 = vmatpush.msra.mxu0 %v36
    %1457 = vmatpush.msra.mxu0 %v34
    %1458 = vmatpush.msra.mxu0 %v32
    %1459 = vmatmul.f32.gmra.mxu0 %v1421
    %v1460 = vpop.f32.mrf.mxu0
    %v1461 = vadd.f32 0.0, %v1460
    %1462 = vdwg.mxu0
    %v1464 = vsel %vm79, %v1416, 0
    %1466 = vmatpush.msra.mxu0 0.0
    %1467 = vmatpush.msra.mxu0 0.0
    %1468 = vmatpush.msra.mxu0 0.0
    %1469 = vmatpush.msra.mxu0 0.0
    %1470 = vmatpush.msra.mxu0 0.0
    %1471 = vmatpush.msra.mxu0 0.0
    %1472 = vmatpush.msra.mxu0 0.0
    %1473 = vmatpush.msra.mxu0 0.0
    %1474 = vmatpush.msra.mxu0 0.0
    %1475 = vmatpush.msra.mxu0 0.0
    %1476 = vmatpush.msra.mxu0 0.0
    %1477 = vmatpush.msra.mxu0 0.0
    %1478 = vmatpush.msra.mxu0 %v42
    %1479 = vmatpush.msra.mxu0 %v41
    %1480 = vmatpush.msra.mxu0 %v40
    %1481 = vmatpush.msra.mxu0 %v39
    %1482 = vmatmul.f32.gmra.mxu0 %v1464
    %v1483 = vpop.f32.mrf.mxu0
    %v1484 = vadd.f32 0.0, %v1483
    %1485 = vdwg.mxu0
    %v1486 = vadd.f32 %v1441, %v251
    %v1487 = vadd.f32 %v1461, %v251
    %1489 = vrot.lane.b32.xlu0 %v1484, 96
    %v1490 = vpop.permute.xlu0 %1489
    %v1492 = vadd.f32 %v1486, %v1490
    %v1493 = vadd.f32 %v1487, %v1490
    %v1494 = vxor.u32 %v1492, 2147483648
    %v1495 = vxor.u32 %v1493, 2147483648
    %v1496 = vmul.f32 %v1494, 1.442695
    %v1497 = vpow.pop %v1496
    %v1498 = vmul.f32 %v1495, 1.442695
    %v1499 = vpow.pop %v1498
    %v1500 = vadd.f32 %v1497, 1.0
    %v1501 = vadd.f32 %v1499, 1.0
    %v1502 = vrcp.pop %v1500
    %v1503 = vmul.f32 %v1500, %v1502
    %v1504 = vsub.f32 1.0, %v1503
    %v1505 = vmul.f32 %v1502, %v1504
    %v1506 = vadd.f32 %v1502, %v1505
    %vm1507 = vweird.f32 %v1500
    %vm1508 = vweird.f32 %v1502
    %vm1509 = vmor %vm1507, %vm1508
    %v1510 = vsel %vm1509, %v1502, %v1506
    %v1511 = vand.u32 2147483647, %v1500
    %vm1512 = vcmp.eq.f32.partialorder %v1511, 8.507059e+37
    %v1513 = vand.u32 %v1500, 2147483648
    %v1514 = vor.u32 1.1754944e-38, %v1513
    %v1515 = vsel %vm1512, %v1514, %v1510
    %v1516 = vmul.f32 1.0, %v1515
    %v1517 = vrcp.pop %v1501
    %v1518 = vmul.f32 %v1501, %v1517
    %v1519 = vsub.f32 1.0, %v1518
    %v1520 = vmul.f32 %v1517, %v1519
    %v1521 = vadd.f32 %v1517, %v1520
    %vm1522 = vweird.f32 %v1501
    %vm1523 = vweird.f32 %v1517
    %vm1524 = vmor %vm1522, %vm1523
    %v1525 = vsel %vm1524, %v1517, %v1521
    %v1526 = vand.u32 2147483647, %v1501
    %vm1527 = vcmp.eq.f32.partialorder %v1526, 8.507059e+37
    %v1528 = vand.u32 %v1501, 2147483648
    %v1529 = vor.u32 1.1754944e-38, %v1528
    %v1530 = vsel %vm1527, %v1529, %v1525
    %v1531 = vmul.f32 1.0, %v1530
    %v1532 = vadd.f32 %v1484, %v345
    %1534 = vrot.lane.b32.xlu0 %v1532, 32
    %v1535 = vpop.permute.xlu0 %1534
    %v1537 = vmul.f32 %v1516, %v1535
    %1539 = vrot.lane.b32.xlu0 %v1537, 64
    %v1540 = vpop.permute.xlu0 %1539
    %v1542 = vadd.f32 %v1487, %v1540
    %v1543 = vtanh.pop %v1542
    %v1544 = vsub.f32 1.0, %v1531
    %1546 = vrot.lane.b32.xlu0 %v1543, 96
    %v1547 = vpop.permute.xlu0 %1546
    %v1549 = vmul.f32 %v1544, %v1547
    %v1550 = vmul.f32 %v1531, %v1416
    %v1551 = vadd.f32 %v1549, %v1550
    %v1552 = vadd.f32 %v1417, %v1551
    %v1554 = vrot.slane %v1552, 2
    %v1555 = vsel %vm79, %v1554, 0
    %1557 = vmatpush.msra.mxu0 0.0
    %1558 = vmatpush.msra.mxu0 0.0
    %1559 = vmatpush.msra.mxu0 0.0
    %1560 = vmatpush.msra.mxu0 0.0
    %1561 = vmatpush.msra.mxu0 0.0
    %1562 = vmatpush.msra.mxu0 0.0
    %1563 = vmatpush.msra.mxu0 0.0
    %1564 = vmatpush.msra.mxu0 0.0
    %1565 = vmatpush.msra.mxu0 0.0
    %1566 = vmatpush.msra.mxu0 0.0
    %1567 = vmatpush.msra.mxu0 0.0
    %1568 = vmatpush.msra.mxu0 0.0
    %1569 = vmatpush.msra.mxu0 %v50
    %1570 = vmatpush.msra.mxu0 %v49
    %1571 = vmatpush.msra.mxu0 %v48
    %1572 = vmatpush.msra.mxu0 %v47
    %1573 = vmatmul.f32.gmra.mxu0 %v1555
    %v1574 = vpop.f32.mrf.mxu0
    %v1575 = vadd.f32 0.0, %v1574
    %1576 = vdwg.mxu0
    %v1577 = vsel %vm79, %v1552, 0
    %1579 = vmatpush.msra.mxu0 0.0
    %1580 = vmatpush.msra.mxu0 0.0
    %1581 = vmatpush.msra.mxu0 0.0
    %1582 = vmatpush.msra.mxu0 0.0
    %1583 = vmatpush.msra.mxu0 0.0
    %1584 = vmatpush.msra.mxu0 0.0
    %1585 = vmatpush.msra.mxu0 0.0
    %1586 = vmatpush.msra.mxu0 0.0
    %1587 = vmatpush.msra.mxu0 0.0
    %1588 = vmatpush.msra.mxu0 0.0
    %1589 = vmatpush.msra.mxu0 0.0
    %1590 = vmatpush.msra.mxu0 0.0
    %1591 = vmatpush.msra.mxu0 %v46
    %1592 = vmatpush.msra.mxu0 %v45
    %1593 = vmatpush.msra.mxu0 %v44
    %1594 = vmatpush.msra.mxu0 %v43
    %1595 = vmatmul.f32.gmra.mxu0 %v1577
    %v1596 = vpop.f32.mrf.mxu0
    %v1597 = vadd.f32 %v1575, %v1596
    %1598 = vdwg.mxu0
    %v1599 = vadd.f32 %v1597, %v67
    %v1600 = vmul.f32 %v1599, 0.5
    %v1601 = vmul.f32 %v1599, 0.70710677
    %vm1602 = vcmp.ge.f32.partialorder %v1601, 0.0
    %v1603 = vsel %vm1602, 1.0, -1.0
    %v1604 = vand.u32 2147483647, %v1601
    %v1605 = vmul.f32 %v1604, 0.3275911
    %v1606 = vadd.f32 %v1605, 1.0
    %v1607 = vrcp.pop %v1606
    %v1608 = vmul.f32 %v1606, %v1607
    %v1609 = vsub.f32 1.0, %v1608
    %v1610 = vmul.f32 %v1607, %v1609
    %v1611 = vadd.f32 %v1607, %v1610
    %vm1612 = vweird.f32 %v1606
    %vm1613 = vweird.f32 %v1607
    %vm1614 = vmor %vm1612, %vm1613
    %v1615 = vsel %vm1614, %v1607, %v1611
    %v1616 = vand.u32 2147483647, %v1606
    %vm1617 = vcmp.eq.f32.partialorder %v1616, 8.507059e+37
    %v1618 = vand.u32 %v1606, 2147483648
    %v1619 = vor.u32 1.1754944e-38, %v1618
    %v1620 = vsel %vm1617, %v1619, %v1615
    %v1621 = vmul.f32 1.0, %v1620
    %v1622 = vmul.f32 %v1621, 1.0614054
    %v1623 = vadd.f32 %v1622, -1.4531521
    %v1624 = vmul.f32 %v1623, %v1621
    %v1625 = vadd.f32 %v1624, 1.4214138
    %v1626 = vmul.f32 %v1625, %v1621
    %v1627 = vadd.f32 %v1626, -0.28449672
    %v1628 = vmul.f32 %v1627, %v1621
    %v1629 = vadd.f32 %v1628, 0.2548296
    %v1630 = vmul.f32 %v1629, %v1621
    %v1631 = vsub.f32 0.0, %v1604
    %v1632 = vmul.f32 %v1631, %v1604
    %v1633 = vmul.f32 %v1632, 1.442695
    %v1634 = vpow.pop %v1633
    %v1635 = vmul.f32 %v1630, %v1634
    %v1636 = vsub.f32 1.0, %v1635
    %v1637 = vmul.f32 %v1603, %v1636
    %v1638 = vadd.f32 %v1637, 1.0
    %v1639 = vmul.f32 %v1600, %v1638
    %v1641 = vsel %vm79, %v1639, 0
    %1643 = vmatpush.msra.mxu0 0.0
    %1644 = vmatpush.msra.mxu0 0.0
    %1645 = vmatpush.msra.mxu0 0.0
    %1646 = vmatpush.msra.mxu0 0.0
    %1647 = vmatpush.msra.mxu0 0.0
    %1648 = vmatpush.msra.mxu0 0.0
    %1649 = vmatpush.msra.mxu0 0.0
    %1650 = vmatpush.msra.mxu0 0.0
    %1651 = vmatpush.msra.mxu0 0.0
    %1652 = vmatpush.msra.mxu0 0.0
    %1653 = vmatpush.msra.mxu0 0.0
    %1654 = vmatpush.msra.mxu0 0.0
    %1655 = vmatpush.msra.mxu0 %v54
    %1656 = vmatpush.msra.mxu0 %v53
    %1657 = vmatpush.msra.mxu0 %v52
    %1658 = vmatpush.msra.mxu0 %v51
    %1659 = vmatmul.f32.gmra.mxu0 %v1641
    %v1660 = vpop.f32.mrf.mxu0
    %v1661 = vadd.f32 %v68, %v1660
    %1662 = vdwg.mxu0
    %v1663 = vmax.f32 %v1661, 0.0
    %v1664 = vadd.f32 %v1639, %v1663
    %v1666 = vperm.slane %v70, 0
    %v1667 = vperm.slane %v70, 1
    %v1671 = vsel %vm79, %v1664, 0
    %1673 = vmatpush.msra.mxu0 0.0
    %1674 = vmatpush.msra.mxu0 0.0
    %1675 = vmatpush.msra.mxu0 0.0
    %1676 = vmatpush.msra.mxu0 0.0
    %1677 = vmatpush.msra.mxu0 0.0
    %1678 = vmatpush.msra.mxu0 0.0
    %1679 = vmatpush.msra.mxu0 0.0
    %1680 = vmatpush.msra.mxu0 0.0
    %1681 = vmatpush.msra.mxu0 0.0
    %1682 = vmatpush.msra.mxu0 0.0
    %1683 = vmatpush.msra.mxu0 0.0
    %1684 = vmatpush.msra.mxu0 0.0
    %1685 = vmatpush.msra.mxu0 %v61
    %1686 = vmatpush.msra.mxu0 %v59
    %1687 = vmatpush.msra.mxu0 %v57
    %1688 = vmatpush.msra.mxu0 %v55
    %1689 = vmatmul.f32.gmra.mxu0 %v1671
    %v1690 = vpop.f32.mrf.mxu0
    %v1691 = vadd.f32 %v1666, %v1690
    %1692 = vdwg.mxu0
    %1693 = vmatpush.msra.mxu0 0.0
    %1694 = vmatpush.msra.mxu0 0.0
    %1695 = vmatpush.msra.mxu0 0.0
    %1696 = vmatpush.msra.mxu0 0.0
    %1697 = vmatpush.msra.mxu0 0.0
    %1698 = vmatpush.msra.mxu0 0.0
    %1699 = vmatpush.msra.mxu0 0.0
    %1700 = vmatpush.msra.mxu0 0.0
    %1701 = vmatpush.msra.mxu0 0.0
    %1702 = vmatpush.msra.mxu0 0.0
    %1703 = vmatpush.msra.mxu0 0.0
    %1704 = vmatpush.msra.mxu0 0.0
    %1705 = vmatpush.msra.mxu0 %v62
    %1706 = vmatpush.msra.mxu0 %v60
    %1707 = vmatpush.msra.mxu0 %v58
    %1708 = vmatpush.msra.mxu0 %v56
    %1709 = vmatmul.f32.gmra.mxu0 %v1671
    %v1710 = vpop.f32.mrf.mxu0
    %v1711 = vadd.f32 %v1667, %v1710
    %1712 = vdwg.mxu0
    %v1715 = vrot.slane %v1711, 6
    %vm1716 = vcmask 1041408
    %v1717 = vsel %vm1716, %v1691, %v1715
    %1719 = vst [vmem:[%s2] sm:$0xf] %v1717
    // Predicated region
    $region14: #{forward_logits.1} parent=1 // pred_check
      _
    $region15: #{forward_logits.1} parent=1 // pred_check_branch
      %1721 = sbr.rel (0) target = $region17
    $region16: #{forward_logits.1} parent=1 // pred_region
      _
    $region17: #{forward_logits.1} parent=1 // pred_fallthru
      _
    // Predicated region
    $region18: #{forward_logits.1} parent=1 // pred_check
      _
    $region19: #{forward_logits.1} parent=1 // pred_check_branch
      %1723 = sbr.rel (0) target = $region21
    $region20: #{forward_logits.1} parent=1 // pred_region
      _
    $region21: #{forward_logits.1} parent=1 // pred_fallthru
      _
    %1724 = vsyncpa [#allocation3], 1

</llo_original>
